<compile_context>
chip_gen: v7x
topology: tpu7x:2x2x1
jax: 0.10.0
libtpu: 0.0.40
codegen_flags: <defaults>
</compile_context>

<pallas_src>
import functools

import jax
import jax.numpy as jnp
from jax.experimental import pallas as pl
from jax.experimental.pallas import tpu as pltpu

# Real layer widths of the PyTorch module.
DIMS = [1, 256, 256, 128, 128, 64, 64, 1]

TB = 256  # batch tile, lives on the lane axis (multiple of 128)


def _mlp_kernel(x_ref,
                w1, b1, w2, b2, w3, b3, w4, b4, w5, b5, w6, b6, w7, b7,
                o_ref):
    """Whole 7-layer MLP for one (1, TB) batch tile; weights resident in VMEM.

    Hidden weights are stored in PyTorch (out, in) layout so the matmuls are
    W @ h with h = (in_features, TB); TB stays on the lane axis throughout.
    """
    x = x_ref[...]                                        # (1, TB) f32

    # Layer 1 (1 -> 256): contraction depth is 1 -> pure VPU broadcast-mul,
    # no zero-padded MXU pass, no padded input DMA.
    h = jnp.maximum(w1[...] * x + b1[...], 0.0)           # (256, TB) f32

    def dense_relu(h, w_ref, b_ref):
        acc = jnp.dot(w_ref[...], h.astype(w_ref.dtype),
                      preferred_element_type=jnp.float32)
        return jnp.maximum(acc + b_ref[...], 0.0)         # bias/ReLU in f32

    h = dense_relu(h, w2, b2)                             # (256, TB)
    h = dense_relu(h, w3, b3)                             # (128, TB)
    h = dense_relu(h, w4, b4)                             # (128, TB)
    h = dense_relu(h, w5, b5)                             # (64,  TB)
    h = dense_relu(h, w6, b6)                             # (64,  TB)

    # Output layer (64 -> 1): VPU multiply + sublane reduction + exp.
    logit = jnp.sum(w7[...] * h, axis=0, keepdims=True) + b7[...]   # (1, TB)
    o_ref[...] = jnp.exp(logit)


def init_params(key):
    """PyTorch nn.Linear-style init: U(-1/sqrt(fan_in), +1/sqrt(fan_in))."""
    params = []
    for li in range(len(DIMS) - 1):
        fan_in, fan_out = DIMS[li], DIMS[li + 1]
        key, kw, kb = jax.random.split(key, 3)
        bound = 1.0 / jnp.sqrt(fan_in)
        # PyTorch layout: weight (out, in), bias (out,)
        w = jax.random.uniform(kw, (fan_out, fan_in), jnp.float32, -bound, bound)
        b = jax.random.uniform(kb, (fan_out,), jnp.float32, -bound, bound)
        params.append((w, b))
    return params


def prep_params(params, mxu_dtype=jnp.float32):
    """Arrange params for the kernel; optionally cast matmul weights to bf16.

    Layer-1 weight stays a (256, 1) f32 column (VPU work), last-layer weight
    becomes a (64, 1) f32 column (VPU reduce).  Hidden weights keep (out, in)
    layout and are cast to `mxu_dtype` (bf16 recommended on v6e/v7x).  Biases
    become (out, 1) f32 columns.
    """
    flat = []
    n = len(params)
    for li, (w, b) in enumerate(params):
        if li == 0:
            wk = w                       # (256, 1) f32
        elif li == n - 1:
            wk = w.T                     # (1, 64) -> (64, 1) f32
        else:
            wk = w.astype(mxu_dtype)     # (out, in), MXU operand dtype
        flat += [wk, b.reshape(-1, 1).astype(jnp.float32)]
    return tuple(flat)


@functools.partial(jax.jit, static_argnames=("tb",))
def pdn_forward(x, params_flat, tb=TB):
    """x: (B, 1) float32 -> (B, 1) float32, matching the PyTorch forward."""
    B = x.shape[0]
    n_tiles = pl.cdiv(B, tb)
    bp = n_tiles * tb

    # Batch on the lane axis: a single (1, Bp) row, zero-padded to a tile
    # multiple.  Pad rows produce garbage outputs that are sliced off below.
    x_lane = jnp.zeros((1, bp), jnp.float32).at[0, :B].set(x[:, 0])

    # Full-array blocks with constant index_maps: weights are DMA'd once and
    # stay VMEM-resident across the batch grid (no per-step re-copy).
    full_spec = lambda a: pl.BlockSpec(a.shape, lambda i: (0, 0))
    in_specs = [pl.BlockSpec((1, tb), lambda i: (0, i))]
    in_specs += [full_spec(a) for a in params_flat]

    out = pl.pallas_call(
        _mlp_kernel,
        out_shape=jax.ShapeDtypeStruct((1, bp), jnp.float32),
        grid_spec=pltpu.PrefetchScalarGridSpec(
            num_scalar_prefetch=0,
            grid=(n_tiles,),
            in_specs=in_specs,
            out_specs=pl.BlockSpec((1, tb), lambda i: (0, i)),
        ),
        compiler_params=pltpu.CompilerParams(
            dimension_semantics=("parallel",)),
    )(x_lane, *params_flat)
    return out[0, :B].reshape(B, 1)


def pdn_reference(x, params):
    """Pure-JAX f32 reference of the PyTorch forward."""
    hp = jax.lax.Precision.HIGHEST
    h = x
    for w, b in params[:-1]:
        h = jnp.maximum(jnp.dot(h, w.T, precision=hp) + b, 0.0)
    w, b = params[-1]
    return jnp.exp(jnp.dot(h, w.T, precision=hp) + b)


if __name__ == "__main__":
    key = jax.random.PRNGKey(0)
    params = init_params(key)

    # 512 rows -> 2 grid steps of TB=256 (even step count helps v7x's 2 TCs).
    B = 512
    x = jax.random.normal(jax.random.fold_in(key, 123), (B, 1), jnp.float32)
    y_ref = pdn_reference(x, params)

    # f32 MXU-operand path: parity with the f32 PyTorch module.
    y32 = pdn_forward(x, prep_params(params, jnp.float32))
    jax.block_until_ready(y32)
    assert y32.shape == (B, 1)
    assert jnp.allclose(y32, y_ref, rtol=1e-4, atol=1e-5), (y32[:4], y_ref[:4])

    # bf16 MXU-operand fast path (v6e/v7x); accumulation stays f32, so only a
    # relaxed tolerance against the f32 reference is expected.
    y16 = pdn_forward(x, prep_params(params, jnp.bfloat16))
    jax.block_until_ready(y16)
    assert jnp.allclose(y16, y_ref, rtol=1e-1, atol=1e-2), (y16[:4], y_ref[:4])

    # Batch not a multiple of TB exercises the padding path.
    y_small = pdn_forward(x[:16], prep_params(params, jnp.float32))
    jax.block_until_ready(y_small)
    assert y_small.shape == (16, 1)
    assert jnp.allclose(y_small, y_ref[:16], rtol=1e-4, atol=1e-5)

    print("KERNEL_OK")
</pallas_src>

<mosaic_0001>
module attributes {stable_mosaic.version = 11 : i64} {
  func.func @_mlp_kernel(%arg0: i32, %arg1: memref<1x256xf32, #tpu.memory_space<vmem>>, %arg2: memref<256x1xf32, #tpu.memory_space<vmem>>, %arg3: memref<256x1xf32, #tpu.memory_space<vmem>>, %arg4: memref<256x256xf32, #tpu.memory_space<vmem>>, %arg5: memref<256x1xf32, #tpu.memory_space<vmem>>, %arg6: memref<128x256xf32, #tpu.memory_space<vmem>>, %arg7: memref<128x1xf32, #tpu.memory_space<vmem>>, %arg8: memref<128x128xf32, #tpu.memory_space<vmem>>, %arg9: memref<128x1xf32, #tpu.memory_space<vmem>>, %arg10: memref<64x128xf32, #tpu.memory_space<vmem>>, %arg11: memref<64x1xf32, #tpu.memory_space<vmem>>, %arg12: memref<64x64xf32, #tpu.memory_space<vmem>>, %arg13: memref<64x1xf32, #tpu.memory_space<vmem>>, %arg14: memref<64x1xf32, #tpu.memory_space<vmem>>, %arg15: memref<1x1xf32, #tpu.memory_space<vmem>>, %arg16: memref<1x256xf32, #tpu.memory_space<vmem>>) attributes {dimension_semantics = [#tpu.dimension_semantics<parallel>], iteration_bounds = array<i64: 2>, scalar_prefetch = 0 : i64, scratch_operands = 0 : i64, tpu.core_type = #tpu.core_type<tc>, window_params = [{transform_indices = @transform_0, window_bounds = array<i64: 1, 256>}, {pipeline_mode = #tpu.pipeline_mode<synchronous>, transform_indices = @transform_1, window_bounds = array<i64: 256, 1>}, {pipeline_mode = #tpu.pipeline_mode<synchronous>, transform_indices = @transform_2, window_bounds = array<i64: 256, 1>}, {pipeline_mode = #tpu.pipeline_mode<synchronous>, transform_indices = @transform_3, window_bounds = array<i64: 256, 256>}, {pipeline_mode = #tpu.pipeline_mode<synchronous>, transform_indices = @transform_4, window_bounds = array<i64: 256, 1>}, {pipeline_mode = #tpu.pipeline_mode<synchronous>, transform_indices = @transform_5, window_bounds = array<i64: 128, 256>}, {pipeline_mode = #tpu.pipeline_mode<synchronous>, transform_indices = @transform_6, window_bounds = array<i64: 128, 1>}, {pipeline_mode = #tpu.pipeline_mode<synchronous>, transform_indices = @transform_7, window_bounds = array<i64: 128, 128>}, {pipeline_mode = #tpu.pipeline_mode<synchronous>, transform_indices = @transform_8, window_bounds = array<i64: 128, 1>}, {pipeline_mode = #tpu.pipeline_mode<synchronous>, transform_indices = @transform_9, window_bounds = array<i64: 64, 128>}, {pipeline_mode = #tpu.pipeline_mode<synchronous>, transform_indices = @transform_10, window_bounds = array<i64: 64, 1>}, {pipeline_mode = #tpu.pipeline_mode<synchronous>, transform_indices = @transform_11, window_bounds = array<i64: 64, 64>}, {pipeline_mode = #tpu.pipeline_mode<synchronous>, transform_indices = @transform_12, window_bounds = array<i64: 64, 1>}, {pipeline_mode = #tpu.pipeline_mode<synchronous>, transform_indices = @transform_13, window_bounds = array<i64: 64, 1>}, {pipeline_mode = #tpu.pipeline_mode<synchronous>, transform_indices = @transform_14, window_bounds = array<i64: 1, 1>}, {transform_indices = @transform_15, window_bounds = array<i64: 1, 256>}]} {
    %c0 = arith.constant 0 : index
    %c0_0 = arith.constant 0 : index
    %0 = vector.load %arg1[%c0, %c0_0] : memref<1x256xf32, #tpu.memory_space<vmem>>, vector<1x256xf32>
    %c0_1 = arith.constant 0 : index
    %c0_2 = arith.constant 0 : index
    %1 = vector.load %arg2[%c0_1, %c0_2] : memref<256x1xf32, #tpu.memory_space<vmem>>, vector<256x1xf32>
    %2 = vector.broadcast %1 : vector<256x1xf32> to vector<256x256xf32>
    %3 = vector.broadcast %0 : vector<1x256xf32> to vector<256x256xf32>
    %4 = arith.mulf %2, %3 : vector<256x256xf32>
    %c0_3 = arith.constant 0 : index
    %c0_4 = arith.constant 0 : index
    %5 = vector.load %arg3[%c0_3, %c0_4] : memref<256x1xf32, #tpu.memory_space<vmem>>, vector<256x1xf32>
    %6 = vector.broadcast %5 : vector<256x1xf32> to vector<256x256xf32>
    %7 = arith.addf %4, %6 : vector<256x256xf32>
    %cst = arith.constant 0.000000e+00 : f32
    %8 = vector.broadcast %cst : f32 to vector<256x256xf32>
    %9 = arith.maximumf %7, %8 : vector<256x256xf32>
    %c0_5 = arith.constant 0 : index
    %c0_6 = arith.constant 0 : index
    %10 = vector.load %arg4[%c0_5, %c0_6] : memref<256x256xf32, #tpu.memory_space<vmem>>, vector<256x256xf32>
    %cst_7 = arith.constant dense<0.000000e+00> : vector<256x256xf32>
    %11 = tpu.matmul %10, %9, %cst_7 {dimension_numbers = #tpu.dot_dimension_numbers<[1], [0], [0], [1], [0, 0, 1, 1], [], []>} : vector<256x256xf32>, vector<256x256xf32>, vector<256x256xf32> -> vector<256x256xf32>
    %c0_8 = arith.constant 0 : index
    %c0_9 = arith.constant 0 : index
    %12 = vector.load %arg5[%c0_8, %c0_9] : memref<256x1xf32, #tpu.memory_space<vmem>>, vector<256x1xf32>
    %13 = vector.broadcast %12 : vector<256x1xf32> to vector<256x256xf32>
    %14 = arith.addf %11, %13 : vector<256x256xf32>
    %cst_10 = arith.constant 0.000000e+00 : f32
    %15 = vector.broadcast %cst_10 : f32 to vector<256x256xf32>
    %16 = arith.maximumf %14, %15 : vector<256x256xf32>
    %c0_11 = arith.constant 0 : index
    %c0_12 = arith.constant 0 : index
    %17 = vector.load %arg6[%c0_11, %c0_12] : memref<128x256xf32, #tpu.memory_space<vmem>>, vector<128x256xf32>
    %cst_13 = arith.constant dense<0.000000e+00> : vector<128x256xf32>
    %18 = tpu.matmul %17, %16, %cst_13 {dimension_numbers = #tpu.dot_dimension_numbers<[1], [0], [0], [1], [0, 0, 1, 1], [], []>} : vector<128x256xf32>, vector<256x256xf32>, vector<128x256xf32> -> vector<128x256xf32>
    %c0_14 = arith.constant 0 : index
    %c0_15 = arith.constant 0 : index
    %19 = vector.load %arg7[%c0_14, %c0_15] : memref<128x1xf32, #tpu.memory_space<vmem>>, vector<128x1xf32>
    %20 = vector.broadcast %19 : vector<128x1xf32> to vector<128x256xf32>
    %21 = arith.addf %18, %20 : vector<128x256xf32>
    %cst_16 = arith.constant 0.000000e+00 : f32
    %22 = vector.broadcast %cst_16 : f32 to vector<128x256xf32>
    %23 = arith.maximumf %21, %22 : vector<128x256xf32>
    %c0_17 = arith.constant 0 : index
    %c0_18 = arith.constant 0 : index
    %24 = vector.load %arg8[%c0_17, %c0_18] : memref<128x128xf32, #tpu.memory_space<vmem>>, vector<128x128xf32>
    %cst_19 = arith.constant dense<0.000000e+00> : vector<128x256xf32>
    %25 = tpu.matmul %24, %23, %cst_19 {dimension_numbers = #tpu.dot_dimension_numbers<[1], [0], [0], [1], [0, 0, 1, 1], [], []>} : vector<128x128xf32>, vector<128x256xf32>, vector<128x256xf32> -> vector<128x256xf32>
    %c0_20 = arith.constant 0 : index
    %c0_21 = arith.constant 0 : index
    %26 = vector.load %arg9[%c0_20, %c0_21] : memref<128x1xf32, #tpu.memory_space<vmem>>, vector<128x1xf32>
    %27 = vector.broadcast %26 : vector<128x1xf32> to vector<128x256xf32>
    %28 = arith.addf %25, %27 : vector<128x256xf32>
    %cst_22 = arith.constant 0.000000e+00 : f32
    %29 = vector.broadcast %cst_22 : f32 to vector<128x256xf32>
    %30 = arith.maximumf %28, %29 : vector<128x256xf32>
    %c0_23 = arith.constant 0 : index
    %c0_24 = arith.constant 0 : index
    %31 = vector.load %arg10[%c0_23, %c0_24] : memref<64x128xf32, #tpu.memory_space<vmem>>, vector<64x128xf32>
    %cst_25 = arith.constant dense<0.000000e+00> : vector<64x256xf32>
    %32 = tpu.matmul %31, %30, %cst_25 {dimension_numbers = #tpu.dot_dimension_numbers<[1], [0], [0], [1], [0, 0, 1, 1], [], []>} : vector<64x128xf32>, vector<128x256xf32>, vector<64x256xf32> -> vector<64x256xf32>
    %c0_26 = arith.constant 0 : index
    %c0_27 = arith.constant 0 : index
    %33 = vector.load %arg11[%c0_26, %c0_27] : memref<64x1xf32, #tpu.memory_space<vmem>>, vector<64x1xf32>
    %34 = vector.broadcast %33 : vector<64x1xf32> to vector<64x256xf32>
    %35 = arith.addf %32, %34 : vector<64x256xf32>
    %cst_28 = arith.constant 0.000000e+00 : f32
    %36 = vector.broadcast %cst_28 : f32 to vector<64x256xf32>
    %37 = arith.maximumf %35, %36 : vector<64x256xf32>
    %c0_29 = arith.constant 0 : index
    %c0_30 = arith.constant 0 : index
    %38 = vector.load %arg12[%c0_29, %c0_30] : memref<64x64xf32, #tpu.memory_space<vmem>>, vector<64x64xf32>
    %cst_31 = arith.constant dense<0.000000e+00> : vector<64x256xf32>
    %39 = tpu.matmul %38, %37, %cst_31 {dimension_numbers = #tpu.dot_dimension_numbers<[1], [0], [0], [1], [0, 0, 1, 1], [], []>} : vector<64x64xf32>, vector<64x256xf32>, vector<64x256xf32> -> vector<64x256xf32>
    %c0_32 = arith.constant 0 : index
    %c0_33 = arith.constant 0 : index
    %40 = vector.load %arg13[%c0_32, %c0_33] : memref<64x1xf32, #tpu.memory_space<vmem>>, vector<64x1xf32>
    %41 = vector.broadcast %40 : vector<64x1xf32> to vector<64x256xf32>
    %42 = arith.addf %39, %41 : vector<64x256xf32>
    %cst_34 = arith.constant 0.000000e+00 : f32
    %43 = vector.broadcast %cst_34 : f32 to vector<64x256xf32>
    %44 = arith.maximumf %42, %43 : vector<64x256xf32>
    %c0_35 = arith.constant 0 : index
    %c0_36 = arith.constant 0 : index
    %45 = vector.load %arg14[%c0_35, %c0_36] : memref<64x1xf32, #tpu.memory_space<vmem>>, vector<64x1xf32>
    %46 = vector.broadcast %45 : vector<64x1xf32> to vector<64x256xf32>
    %47 = arith.mulf %46, %44 : vector<64x256xf32>
    %cst_37 = arith.constant dense<0.000000e+00> : vector<256xf32>
    %48 = vector.multi_reduction <add>, %47, %cst_37 [0] : vector<64x256xf32> to vector<256xf32>
    %49 = vector.shape_cast %48 : vector<256xf32> to vector<1x256xf32>
    %c0_38 = arith.constant 0 : index
    %c0_39 = arith.constant 0 : index
    %50 = vector.load %arg15[%c0_38, %c0_39] : memref<1x1xf32, #tpu.memory_space<vmem>>, vector<1x1xf32>
    %51 = vector.broadcast %50 : vector<1x1xf32> to vector<1x256xf32>
    %52 = arith.addf %49, %51 : vector<1x256xf32>
    %53 = math.exp %52 : vector<1x256xf32>
    %c0_40 = arith.constant 0 : index
    %c0_41 = arith.constant 0 : index
    %54 = vector.load %arg16[%c0_40, %c0_41] : memref<1x256xf32, #tpu.memory_space<vmem>>, vector<1x256xf32>
    tpu.vector_store %arg16[%c0_40, %c0_41], %53 {strides = array<i32>} : memref<1x256xf32, #tpu.memory_space<vmem>>, vector<1x256xf32>,
    return
  }
  func.func @transform_0(%arg0: i32) -> (i32, i32) {
    %c0_i32 = arith.constant 0 : i32
    %c0_i32_0 = arith.constant 0 : i32
    return %c0_i32, %arg0 : i32, i32
  }
  func.func @transform_1(%arg0: i32) -> (i32, i32) {
    %c0_i32 = arith.constant 0 : i32
    %c0_i32_0 = arith.constant 0 : i32
    %c0_i32_1 = arith.constant 0 : i32
    return %c0_i32, %c0_i32_0 : i32, i32
  }
  func.func @transform_2(%arg0: i32) -> (i32, i32) {
    %c0_i32 = arith.constant 0 : i32
    %c0_i32_0 = arith.constant 0 : i32
    %c0_i32_1 = arith.constant 0 : i32
    return %c0_i32, %c0_i32_0 : i32, i32
  }
  func.func @transform_3(%arg0: i32) -> (i32, i32) {
    %c0_i32 = arith.constant 0 : i32
    %c0_i32_0 = arith.constant 0 : i32
    %c0_i32_1 = arith.constant 0 : i32
    return %c0_i32, %c0_i32_0 : i32, i32
  }
  func.func @transform_4(%arg0: i32) -> (i32, i32) {
    %c0_i32 = arith.constant 0 : i32
    %c0_i32_0 = arith.constant 0 : i32
    %c0_i32_1 = arith.constant 0 : i32
    return %c0_i32, %c0_i32_0 : i32, i32
  }
  func.func @transform_5(%arg0: i32) -> (i32, i32) {
    %c0_i32 = arith.constant 0 : i32
    %c0_i32_0 = arith.constant 0 : i32
    %c0_i32_1 = arith.constant 0 : i32
    return %c0_i32, %c0_i32_0 : i32, i32
  }
  func.func @transform_6(%arg0: i32) -> (i32, i32) {
    %c0_i32 = arith.constant 0 : i32
    %c0_i32_0 = arith.constant 0 : i32
    %c0_i32_1 = arith.constant 0 : i32
    return %c0_i32, %c0_i32_0 : i32, i32
  }
  func.func @transform_7(%arg0: i32) -> (i32, i32) {
    %c0_i32 = arith.constant 0 : i32
    %c0_i32_0 = arith.constant 0 : i32
    %c0_i32_1 = arith.constant 0 : i32
    return %c0_i32, %c0_i32_0 : i32, i32
  }
  func.func @transform_8(%arg0: i32) -> (i32, i32) {
    %c0_i32 = arith.constant 0 : i32
    %c0_i32_0 = arith.constant 0 : i32
    %c0_i32_1 = arith.constant 0 : i32
    return %c0_i32, %c0_i32_0 : i32, i32
  }
  func.func @transform_9(%arg0: i32) -> (i32, i32) {
    %c0_i32 = arith.constant 0 : i32
    %c0_i32_0 = arith.constant 0 : i32
    %c0_i32_1 = arith.constant 0 : i32
    return %c0_i32, %c0_i32_0 : i32, i32
  }
  func.func @transform_10(%arg0: i32) -> (i32, i32) {
    %c0_i32 = arith.constant 0 : i32
    %c0_i32_0 = arith.constant 0 : i32
    %c0_i32_1 = arith.constant 0 : i32
    return %c0_i32, %c0_i32_0 : i32, i32
  }
  func.func @transform_11(%arg0: i32) -> (i32, i32) {
    %c0_i32 = arith.constant 0 : i32
    %c0_i32_0 = arith.constant 0 : i32
    %c0_i32_1 = arith.constant 0 : i32
    return %c0_i32, %c0_i32_0 : i32, i32
  }
  func.func @transform_12(%arg0: i32) -> (i32, i32) {
    %c0_i32 = arith.constant 0 : i32
    %c0_i32_0 = arith.constant 0 : i32
    %c0_i32_1 = arith.constant 0 : i32
    return %c0_i32, %c0_i32_0 : i32, i32
  }
  func.func @transform_13(%arg0: i32) -> (i32, i32) {
    %c0_i32 = arith.constant 0 : i32
    %c0_i32_0 = arith.constant 0 : i32
    %c0_i32_1 = arith.constant 0 : i32
    return %c0_i32, %c0_i32_0 : i32, i32
  }
  func.func @transform_14(%arg0: i32) -> (i32, i32) {
    %c0_i32 = arith.constant 0 : i32
    %c0_i32_0 = arith.constant 0 : i32
    %c0_i32_1 = arith.constant 0 : i32
    return %c0_i32, %c0_i32_0 : i32, i32
  }
  func.func @transform_15(%arg0: i32) -> (i32, i32) {
    %c0_i32 = arith.constant 0 : i32
    %c0_i32_0 = arith.constant 0 : i32
    return %c0_i32, %arg0 : i32, i32
  }
}

</mosaic_0001>

<llo_original>
// kernel: pdn_forward.1
$region0: #{pdn_forward.1}
  #allocation0 [shape = 'u32[]', space=smem, size = 0x4, offset = 0x4, fixed_abs, tag = 'smem constant byte address 0x4 - core index']
  #allocation1 [shape = 'u32[144,128]{1,0:T(1,128)}', space=vmem, size = 0x12000, scoped, tag = 'internal scratch']
  #allocation2 [shape = 'f32[1,1]{1,0:T(1,128)S(1)}', space=vmem, size = 0x200, scoped, tag = 'scoped memory for pdn_forward.1']
  %s0 = inlined_call_operand.vmem [shape: f32[1,512], index: 0, kind: input, shape index: {}]
  %s1 = inlined_call_operand.vmem [shape: f32[256,1], index: 1, kind: input, shape index: {}]
  %s2 = inlined_call_operand.vmem [shape: f32[256,1], index: 2, kind: input, shape index: {}]
  %s3 = inlined_call_operand.vmem [shape: f32[256,256], index: 3, kind: input, shape index: {}]
  %s4 = inlined_call_operand.vmem [shape: f32[256,1], index: 4, kind: input, shape index: {}]
  %s5 = inlined_call_operand.vmem [shape: f32[128,256], index: 5, kind: input, shape index: {}]
  %s6 = inlined_call_operand.vmem [shape: f32[128,1], index: 6, kind: input, shape index: {}]
  %s7 = inlined_call_operand.vmem [shape: f32[128,128], index: 7, kind: input, shape index: {}]
  %s8 = inlined_call_operand.vmem [shape: f32[128,1], index: 8, kind: input, shape index: {}]
  %s9 = inlined_call_operand.vmem [shape: f32[64,128], index: 9, kind: input, shape index: {}]
  %s10 = inlined_call_operand.vmem [shape: f32[64,1], index: 10, kind: input, shape index: {}]
  %s11 = inlined_call_operand.vmem [shape: f32[64,64], index: 11, kind: input, shape index: {}]
  %s12 = inlined_call_operand.vmem [shape: f32[64,1], index: 12, kind: input, shape index: {}]
  %s13 = inlined_call_operand.vmem [shape: f32[64,1], index: 13, kind: input, shape index: {}]
  %s14 = inlined_call_operand.<no memory space> [shape: f32[1,1], index: 14, kind: input, shape index: {}]
  %s15 = inlined_call_operand.hbm [shape: f32[1,512], index: 15, kind: output, shape index: {}]
  %s16 = sld [smem:[#allocation0]]
  $region93: #{pdn_forward.1} parent=0
    _
  %s18 = ssub.s32 1, %s16
  %s19 = scalar_select 0, %s18, %s16
  %v20 = vstv %s14
  %21 = vst [vmem:[#allocation2] sm:$0x1] %v20
  $region1: #{pdn_forward.1} parent=0
    #allocation3 [shape = 'u8[2048]{0}', space=vmem, size = 0x800, scoped, tag = 'output window, operand 0']
    #allocation4 [shape = 's32[2]{0}', space=sflag, size = 0x8, scoped, tag = 'scoped memory for pdn_forward.1']
    %22 = vsyncpa [#allocation4], 0
    %s23 = scalar_lea.sflag [#allocation4], 1
    %24 = vsyncpa %s23, 0
    loop: start=0, step=1, limit=4
    $region2: #{pdn_forward.1} parent=1 // loop_pre_header
      _
    $region3: #{pdn_forward.1} parent=1 // loop_header
      %s26 = sphi 0, %s30
      %p27 = scmp.ge.s32.totalorder %s26, 4
      %s36 = sphi 0, %s38
      %s39 = sphi 0, %s36
      %s40 = sphi 0, %s39
      %s56 = sphi 0, %s40
      %s60 = sphi 0, %s60
      %s62 = sphi 0, %s60
      %s63 = sphi 0, %s62
      %s77 = sphi 0, %s63
      %s81 = sphi 0, %s81
      %s83 = sphi 0, %s81
      %s84 = sphi 0, %s83
      %s98 = sphi 0, %s84
      %s102 = sphi 0, %s102
      %s104 = sphi 0, %s102
      %s105 = sphi 0, %s104
      %s119 = sphi 0, %s105
      %s123 = sphi 0, %s123
      %s125 = sphi 0, %s123
      %s126 = sphi 0, %s125
      %s140 = sphi 0, %s126
      %s144 = sphi 0, %s144
      %s146 = sphi 0, %s144
      %s147 = sphi 0, %s146
      %s161 = sphi 0, %s147
      %s165 = sphi 0, %s165
      %s167 = sphi 0, %s165
      %s168 = sphi 0, %s167
      %s182 = sphi 0, %s168
      %s186 = sphi 0, %s186
      %s188 = sphi 0, %s186
      %s189 = sphi 0, %s188
      %s203 = sphi 0, %s189
      %s207 = sphi 0, %s207
      %s209 = sphi 0, %s207
      %s210 = sphi 0, %s209
      %s224 = sphi 0, %s210
      %s228 = sphi 0, %s228
      %s230 = sphi 0, %s228
      %s231 = sphi 0, %s230
      %s245 = sphi 0, %s231
      %s249 = sphi 0, %s249
      %s251 = sphi 0, %s249
      %s252 = sphi 0, %s251
      %s266 = sphi 0, %s252
      %s270 = sphi 0, %s270
      %s272 = sphi 0, %s270
      %s273 = sphi 0, %s272
      %s287 = sphi 0, %s273
      %s291 = sphi 0, %s291
      %s293 = sphi 0, %s291
      %s294 = sphi 0, %s293
      %s308 = sphi 0, %s294
      %s312 = sphi 0, %s312
      %s314 = sphi 0, %s312
      %s315 = sphi 0, %s314
      %s329 = sphi 0, %s315
      %s333 = sphi 0, %s333
      %s335 = sphi 0, %s333
      %s336 = sphi 0, %s335
      %s350 = sphi 0, %s336
      %s356 = sphi 0, %s358
      %s359 = sphi 0, %s356
      %s360 = sphi 0, %s359
      %s376 = sphi 0, %s360
    $region4: #{pdn_forward.1} parent=1 // loop_header_branch
      %29 = sbr.rel (%p27) target = $region8
    $region5: #{pdn_forward.1} parent=1 // loop_body
      %s31 = ssub.s32 %s26, 1
      %s32 = ssub.s32 %s26, 2
      %s33 = sadd.s32 %s26, 1
      %s34 = ssub.s32 %s26, %s33
      %p35 = scmp.eq.s32.totalorder %s34, 0
      %s37 = sadd.s32 %s36, 1
      %s38 = scalar_select %p35, %s36, %s37
      %p41 = pneg %p35
      %p42 = scmp.eq.s32.totalorder %s26, 1
      %p43 = por %p41, %p42
      %p44 = scmp.ne.s32.totalorder %s36, %s39
      %p45 = scmp.eq.s32.totalorder %s26, 0
      %p46 = por %p44, %p45
      %p47 = scmp.ne.s32.totalorder %s36, %s39
      %p48 = scmp.eq.s32.totalorder %s31, 1
      %p49 = por %p47, %p48
      %p50 = scmp.ne.s32.totalorder %s39, %s40
      %p51 = scmp.eq.s32.totalorder %s31, 0
      %p52 = por %p50, %p51
      %p53 = scmp.ne.s32.totalorder %s39, %s40
      %p54 = scmp.eq.s32.totalorder %s32, 1
      %p55 = por %p53, %p54
      %p57 = scmp.ne.s32.totalorder %s40, %s56
      %p58 = scmp.eq.s32.totalorder %s32, 0
      %p59 = por %p57, %p58
      %s61 = sadd.s32 %s60, 1
      %p64 = scmp.eq.s32.totalorder %s26, 1
      %p65 = scmp.ne.s32.totalorder %s60, %s62
      %p66 = scmp.eq.s32.totalorder %s26, 0
      %p67 = por %p65, %p66
      %p68 = scmp.ne.s32.totalorder %s60, %s62
      %p69 = scmp.eq.s32.totalorder %s31, 1
      %p70 = por %p68, %p69
      %p71 = scmp.ne.s32.totalorder %s62, %s63
      %p72 = scmp.eq.s32.totalorder %s31, 0
      %p73 = por %p71, %p72
      %p74 = scmp.ne.s32.totalorder %s62, %s63
      %p75 = scmp.eq.s32.totalorder %s32, 1
      %p76 = por %p74, %p75
      %p78 = scmp.ne.s32.totalorder %s63, %s77
      %p79 = scmp.eq.s32.totalorder %s32, 0
      %p80 = por %p78, %p79
      %s82 = sadd.s32 %s81, 1
      %p85 = scmp.eq.s32.totalorder %s26, 1
      %p86 = scmp.ne.s32.totalorder %s81, %s83
      %p87 = scmp.eq.s32.totalorder %s26, 0
      %p88 = por %p86, %p87
      %p89 = scmp.ne.s32.totalorder %s81, %s83
      %p90 = scmp.eq.s32.totalorder %s31, 1
      %p91 = por %p89, %p90
      %p92 = scmp.ne.s32.totalorder %s83, %s84
      %p93 = scmp.eq.s32.totalorder %s31, 0
      %p94 = por %p92, %p93
      %p95 = scmp.ne.s32.totalorder %s83, %s84
      %p96 = scmp.eq.s32.totalorder %s32, 1
      %p97 = por %p95, %p96
      %p99 = scmp.ne.s32.totalorder %s84, %s98
      %p100 = scmp.eq.s32.totalorder %s32, 0
      %p101 = por %p99, %p100
      %s103 = sadd.s32 %s102, 1
      %p106 = scmp.eq.s32.totalorder %s26, 1
      %p107 = scmp.ne.s32.totalorder %s102, %s104
      %p108 = scmp.eq.s32.totalorder %s26, 0
      %p109 = por %p107, %p108
      %p110 = scmp.ne.s32.totalorder %s102, %s104
      %p111 = scmp.eq.s32.totalorder %s31, 1
      %p112 = por %p110, %p111
      %p113 = scmp.ne.s32.totalorder %s104, %s105
      %p114 = scmp.eq.s32.totalorder %s31, 0
      %p115 = por %p113, %p114
      %p116 = scmp.ne.s32.totalorder %s104, %s105
      %p117 = scmp.eq.s32.totalorder %s32, 1
      %p118 = por %p116, %p117
      %p120 = scmp.ne.s32.totalorder %s105, %s119
      %p121 = scmp.eq.s32.totalorder %s32, 0
      %p122 = por %p120, %p121
      %s124 = sadd.s32 %s123, 1
      %p127 = scmp.eq.s32.totalorder %s26, 1
      %p128 = scmp.ne.s32.totalorder %s123, %s125
      %p129 = scmp.eq.s32.totalorder %s26, 0
      %p130 = por %p128, %p129
      %p131 = scmp.ne.s32.totalorder %s123, %s125
      %p132 = scmp.eq.s32.totalorder %s31, 1
      %p133 = por %p131, %p132
      %p134 = scmp.ne.s32.totalorder %s125, %s126
      %p135 = scmp.eq.s32.totalorder %s31, 0
      %p136 = por %p134, %p135
      %p137 = scmp.ne.s32.totalorder %s125, %s126
      %p138 = scmp.eq.s32.totalorder %s32, 1
      %p139 = por %p137, %p138
      %p141 = scmp.ne.s32.totalorder %s126, %s140
      %p142 = scmp.eq.s32.totalorder %s32, 0
      %p143 = por %p141, %p142
      %s145 = sadd.s32 %s144, 1
      %p148 = scmp.eq.s32.totalorder %s26, 1
      %p149 = scmp.ne.s32.totalorder %s144, %s146
      %p150 = scmp.eq.s32.totalorder %s26, 0
      %p151 = por %p149, %p150
      %p152 = scmp.ne.s32.totalorder %s144, %s146
      %p153 = scmp.eq.s32.totalorder %s31, 1
      %p154 = por %p152, %p153
      %p155 = scmp.ne.s32.totalorder %s146, %s147
      %p156 = scmp.eq.s32.totalorder %s31, 0
      %p157 = por %p155, %p156
      %p158 = scmp.ne.s32.totalorder %s146, %s147
      %p159 = scmp.eq.s32.totalorder %s32, 1
      %p160 = por %p158, %p159
      %p162 = scmp.ne.s32.totalorder %s147, %s161
      %p163 = scmp.eq.s32.totalorder %s32, 0
      %p164 = por %p162, %p163
      %s166 = sadd.s32 %s165, 1
      %p169 = scmp.eq.s32.totalorder %s26, 1
      %p170 = scmp.ne.s32.totalorder %s165, %s167
      %p171 = scmp.eq.s32.totalorder %s26, 0
      %p172 = por %p170, %p171
      %p173 = scmp.ne.s32.totalorder %s165, %s167
      %p174 = scmp.eq.s32.totalorder %s31, 1
      %p175 = por %p173, %p174
      %p176 = scmp.ne.s32.totalorder %s167, %s168
      %p177 = scmp.eq.s32.totalorder %s31, 0
      %p178 = por %p176, %p177
      %p179 = scmp.ne.s32.totalorder %s167, %s168
      %p180 = scmp.eq.s32.totalorder %s32, 1
      %p181 = por %p179, %p180
      %p183 = scmp.ne.s32.totalorder %s168, %s182
      %p184 = scmp.eq.s32.totalorder %s32, 0
      %p185 = por %p183, %p184
      %s187 = sadd.s32 %s186, 1
      %p190 = scmp.eq.s32.totalorder %s26, 1
      %p191 = scmp.ne.s32.totalorder %s186, %s188
      %p192 = scmp.eq.s32.totalorder %s26, 0
      %p193 = por %p191, %p192
      %p194 = scmp.ne.s32.totalorder %s186, %s188
      %p195 = scmp.eq.s32.totalorder %s31, 1
      %p196 = por %p194, %p195
      %p197 = scmp.ne.s32.totalorder %s188, %s189
      %p198 = scmp.eq.s32.totalorder %s31, 0
      %p199 = por %p197, %p198
      %p200 = scmp.ne.s32.totalorder %s188, %s189
      %p201 = scmp.eq.s32.totalorder %s32, 1
      %p202 = por %p200, %p201
      %p204 = scmp.ne.s32.totalorder %s189, %s203
      %p205 = scmp.eq.s32.totalorder %s32, 0
      %p206 = por %p204, %p205
      %s208 = sadd.s32 %s207, 1
      %p211 = scmp.eq.s32.totalorder %s26, 1
      %p212 = scmp.ne.s32.totalorder %s207, %s209
      %p213 = scmp.eq.s32.totalorder %s26, 0
      %p214 = por %p212, %p213
      %p215 = scmp.ne.s32.totalorder %s207, %s209
      %p216 = scmp.eq.s32.totalorder %s31, 1
      %p217 = por %p215, %p216
      %p218 = scmp.ne.s32.totalorder %s209, %s210
      %p219 = scmp.eq.s32.totalorder %s31, 0
      %p220 = por %p218, %p219
      %p221 = scmp.ne.s32.totalorder %s209, %s210
      %p222 = scmp.eq.s32.totalorder %s32, 1
      %p223 = por %p221, %p222
      %p225 = scmp.ne.s32.totalorder %s210, %s224
      %p226 = scmp.eq.s32.totalorder %s32, 0
      %p227 = por %p225, %p226
      %s229 = sadd.s32 %s228, 1
      %p232 = scmp.eq.s32.totalorder %s26, 1
      %p233 = scmp.ne.s32.totalorder %s228, %s230
      %p234 = scmp.eq.s32.totalorder %s26, 0
      %p235 = por %p233, %p234
      %p236 = scmp.ne.s32.totalorder %s228, %s230
      %p237 = scmp.eq.s32.totalorder %s31, 1
      %p238 = por %p236, %p237
      %p239 = scmp.ne.s32.totalorder %s230, %s231
      %p240 = scmp.eq.s32.totalorder %s31, 0
      %p241 = por %p239, %p240
      %p242 = scmp.ne.s32.totalorder %s230, %s231
      %p243 = scmp.eq.s32.totalorder %s32, 1
      %p244 = por %p242, %p243
      %p246 = scmp.ne.s32.totalorder %s231, %s245
      %p247 = scmp.eq.s32.totalorder %s32, 0
      %p248 = por %p246, %p247
      %s250 = sadd.s32 %s249, 1
      %p253 = scmp.eq.s32.totalorder %s26, 1
      %p254 = scmp.ne.s32.totalorder %s249, %s251
      %p255 = scmp.eq.s32.totalorder %s26, 0
      %p256 = por %p254, %p255
      %p257 = scmp.ne.s32.totalorder %s249, %s251
      %p258 = scmp.eq.s32.totalorder %s31, 1
      %p259 = por %p257, %p258
      %p260 = scmp.ne.s32.totalorder %s251, %s252
      %p261 = scmp.eq.s32.totalorder %s31, 0
      %p262 = por %p260, %p261
      %p263 = scmp.ne.s32.totalorder %s251, %s252
      %p264 = scmp.eq.s32.totalorder %s32, 1
      %p265 = por %p263, %p264
      %p267 = scmp.ne.s32.totalorder %s252, %s266
      %p268 = scmp.eq.s32.totalorder %s32, 0
      %p269 = por %p267, %p268
      %s271 = sadd.s32 %s270, 1
      %p274 = scmp.eq.s32.totalorder %s26, 1
      %p275 = scmp.ne.s32.totalorder %s270, %s272
      %p276 = scmp.eq.s32.totalorder %s26, 0
      %p277 = por %p275, %p276
      %p278 = scmp.ne.s32.totalorder %s270, %s272
      %p279 = scmp.eq.s32.totalorder %s31, 1
      %p280 = por %p278, %p279
      %p281 = scmp.ne.s32.totalorder %s272, %s273
      %p282 = scmp.eq.s32.totalorder %s31, 0
      %p283 = por %p281, %p282
      %p284 = scmp.ne.s32.totalorder %s272, %s273
      %p285 = scmp.eq.s32.totalorder %s32, 1
      %p286 = por %p284, %p285
      %p288 = scmp.ne.s32.totalorder %s273, %s287
      %p289 = scmp.eq.s32.totalorder %s32, 0
      %p290 = por %p288, %p289
      %s292 = sadd.s32 %s291, 1
      %p295 = scmp.eq.s32.totalorder %s26, 1
      %p296 = scmp.ne.s32.totalorder %s291, %s293
      %p297 = scmp.eq.s32.totalorder %s26, 0
      %p298 = por %p296, %p297
      %p299 = scmp.ne.s32.totalorder %s291, %s293
      %p300 = scmp.eq.s32.totalorder %s31, 1
      %p301 = por %p299, %p300
      %p302 = scmp.ne.s32.totalorder %s293, %s294
      %p303 = scmp.eq.s32.totalorder %s31, 0
      %p304 = por %p302, %p303
      %p305 = scmp.ne.s32.totalorder %s293, %s294
      %p306 = scmp.eq.s32.totalorder %s32, 1
      %p307 = por %p305, %p306
      %p309 = scmp.ne.s32.totalorder %s294, %s308
      %p310 = scmp.eq.s32.totalorder %s32, 0
      %p311 = por %p309, %p310
      %s313 = sadd.s32 %s312, 1
      %p316 = scmp.eq.s32.totalorder %s26, 1
      %p317 = scmp.ne.s32.totalorder %s312, %s314
      %p318 = scmp.eq.s32.totalorder %s26, 0
      %p319 = por %p317, %p318
      %p320 = scmp.ne.s32.totalorder %s312, %s314
      %p321 = scmp.eq.s32.totalorder %s31, 1
      %p322 = por %p320, %p321
      %p323 = scmp.ne.s32.totalorder %s314, %s315
      %p324 = scmp.eq.s32.totalorder %s31, 0
      %p325 = por %p323, %p324
      %p326 = scmp.ne.s32.totalorder %s314, %s315
      %p327 = scmp.eq.s32.totalorder %s32, 1
      %p328 = por %p326, %p327
      %p330 = scmp.ne.s32.totalorder %s315, %s329
      %p331 = scmp.eq.s32.totalorder %s32, 0
      %p332 = por %p330, %p331
      %s334 = sadd.s32 %s333, 1
      %p337 = scmp.eq.s32.totalorder %s26, 1
      %p338 = scmp.ne.s32.totalorder %s333, %s335
      %p339 = scmp.eq.s32.totalorder %s26, 0
      %p340 = por %p338, %p339
      %p341 = scmp.ne.s32.totalorder %s333, %s335
      %p342 = scmp.eq.s32.totalorder %s31, 1
      %p343 = por %p341, %p342
      %p344 = scmp.ne.s32.totalorder %s335, %s336
      %p345 = scmp.eq.s32.totalorder %s31, 0
      %p346 = por %p344, %p345
      %p347 = scmp.ne.s32.totalorder %s335, %s336
      %p348 = scmp.eq.s32.totalorder %s32, 1
      %p349 = por %p347, %p348
      %p351 = scmp.ne.s32.totalorder %s336, %s350
      %p352 = scmp.eq.s32.totalorder %s32, 0
      %p353 = por %p351, %p352
      %s354 = ssub.s32 %s26, %s33
      %p355 = scmp.eq.s32.totalorder %s354, 0
      %s357 = sadd.s32 %s356, 1
      %s358 = scalar_select %p355, %s356, %s357
      %p361 = pneg %p355
      %p362 = scmp.eq.s32.totalorder %s26, 1
      %p363 = por %p361, %p362
      %p364 = scmp.ne.s32.totalorder %s356, %s359
      %p365 = scmp.eq.s32.totalorder %s26, 0
      %p366 = por %p364, %p365
      %p367 = scmp.ne.s32.totalorder %s356, %s359
      %p368 = scmp.eq.s32.totalorder %s31, 1
      %p369 = por %p367, %p368
      %p370 = scmp.ne.s32.totalorder %s359, %s360
      %p371 = scmp.eq.s32.totalorder %s31, 0
      %p372 = por %p370, %p371
      %p373 = scmp.ne.s32.totalorder %s359, %s360
      %p374 = scmp.eq.s32.totalorder %s32, 1
      %p375 = por %p373, %p374
      %p377 = scmp.ne.s32.totalorder %s360, %s376
      %p378 = scmp.eq.s32.totalorder %s32, 0
      %p379 = por %p377, %p378
      %p380 = scmp.le.s32.totalorder 1, %s26
      %p381 = scmp.lt.s32.totalorder %s26, 3
      %p382 = pnand %p380, %p381
      %p383 = pneg %p382
      // Predicated region
      $region9: #{pdn_forward.1} parent=5 // pred_check
        _
      $region10: #{pdn_forward.1} parent=5 // pred_check_branch
        %385 = sbr.rel (%p382) target = $region12
      $region11: #{pdn_forward.1} parent=5 // pred_region
        %s386 = ssub.s32 %s26, 1
        // Predicated region
        $region13: #{pdn_forward.1} parent=11 // pred_check
          %p387 = pneg %p73
        $region14: #{pdn_forward.1} parent=11 // pred_check_branch
          %389 = sbr.rel (%p387) target = $region16
        $region15: #{pdn_forward.1} parent=11 // pred_region
          _
        $region16: #{pdn_forward.1} parent=11 // pred_fallthru
          _
        // Predicated region
        $region17: #{pdn_forward.1} parent=11 // pred_check
          %p390 = pneg %p94
        $region18: #{pdn_forward.1} parent=11 // pred_check_branch
          %392 = sbr.rel (%p390) target = $region20
        $region19: #{pdn_forward.1} parent=11 // pred_region
          _
        $region20: #{pdn_forward.1} parent=11 // pred_fallthru
          _
        // Predicated region
        $region21: #{pdn_forward.1} parent=11 // pred_check
          %p393 = pneg %p115
        $region22: #{pdn_forward.1} parent=11 // pred_check_branch
          %395 = sbr.rel (%p393) target = $region24
        $region23: #{pdn_forward.1} parent=11 // pred_region
          _
        $region24: #{pdn_forward.1} parent=11 // pred_fallthru
          _
        // Predicated region
        $region25: #{pdn_forward.1} parent=11 // pred_check
          %p396 = pneg %p136
        $region26: #{pdn_forward.1} parent=11 // pred_check_branch
          %398 = sbr.rel (%p396) target = $region28
        $region27: #{pdn_forward.1} parent=11 // pred_region
          _
        $region28: #{pdn_forward.1} parent=11 // pred_fallthru
          _
        // Predicated region
        $region29: #{pdn_forward.1} parent=11 // pred_check
          %p399 = pneg %p157
        $region30: #{pdn_forward.1} parent=11 // pred_check_branch
          %401 = sbr.rel (%p399) target = $region32
        $region31: #{pdn_forward.1} parent=11 // pred_region
          _
        $region32: #{pdn_forward.1} parent=11 // pred_fallthru
          _
        // Predicated region
        $region33: #{pdn_forward.1} parent=11 // pred_check
          %p402 = pneg %p178
        $region34: #{pdn_forward.1} parent=11 // pred_check_branch
          %404 = sbr.rel (%p402) target = $region36
        $region35: #{pdn_forward.1} parent=11 // pred_region
          _
        $region36: #{pdn_forward.1} parent=11 // pred_fallthru
          _
        // Predicated region
        $region37: #{pdn_forward.1} parent=11 // pred_check
          %p405 = pneg %p199
        $region38: #{pdn_forward.1} parent=11 // pred_check_branch
          %407 = sbr.rel (%p405) target = $region40
        $region39: #{pdn_forward.1} parent=11 // pred_region
          _
        $region40: #{pdn_forward.1} parent=11 // pred_fallthru
          _
        // Predicated region
        $region41: #{pdn_forward.1} parent=11 // pred_check
          %p408 = pneg %p220
        $region42: #{pdn_forward.1} parent=11 // pred_check_branch
          %410 = sbr.rel (%p408) target = $region44
        $region43: #{pdn_forward.1} parent=11 // pred_region
          _
        $region44: #{pdn_forward.1} parent=11 // pred_fallthru
          _
        // Predicated region
        $region45: #{pdn_forward.1} parent=11 // pred_check
          %p411 = pneg %p241
        $region46: #{pdn_forward.1} parent=11 // pred_check_branch
          %413 = sbr.rel (%p411) target = $region48
        $region47: #{pdn_forward.1} parent=11 // pred_region
          _
        $region48: #{pdn_forward.1} parent=11 // pred_fallthru
          _
        // Predicated region
        $region49: #{pdn_forward.1} parent=11 // pred_check
          %p414 = pneg %p262
        $region50: #{pdn_forward.1} parent=11 // pred_check_branch
          %416 = sbr.rel (%p414) target = $region52
        $region51: #{pdn_forward.1} parent=11 // pred_region
          _
        $region52: #{pdn_forward.1} parent=11 // pred_fallthru
          _
        // Predicated region
        $region53: #{pdn_forward.1} parent=11 // pred_check
          %p417 = pneg %p283
        $region54: #{pdn_forward.1} parent=11 // pred_check_branch
          %419 = sbr.rel (%p417) target = $region56
        $region55: #{pdn_forward.1} parent=11 // pred_region
          _
        $region56: #{pdn_forward.1} parent=11 // pred_fallthru
          _
        // Predicated region
        $region57: #{pdn_forward.1} parent=11 // pred_check
          %p420 = pneg %p304
        $region58: #{pdn_forward.1} parent=11 // pred_check_branch
          %422 = sbr.rel (%p420) target = $region60
        $region59: #{pdn_forward.1} parent=11 // pred_region
          _
        $region60: #{pdn_forward.1} parent=11 // pred_fallthru
          _
        // Predicated region
        $region61: #{pdn_forward.1} parent=11 // pred_check
          %p423 = pneg %p325
        $region62: #{pdn_forward.1} parent=11 // pred_check_branch
          %425 = sbr.rel (%p423) target = $region64
        $region63: #{pdn_forward.1} parent=11 // pred_region
          _
        $region64: #{pdn_forward.1} parent=11 // pred_fallthru
          _
        // Predicated region
        $region65: #{pdn_forward.1} parent=11 // pred_check
          %p426 = pneg %p346
        $region66: #{pdn_forward.1} parent=11 // pred_check_branch
          %428 = sbr.rel (%p426) target = $region68
        $region67: #{pdn_forward.1} parent=11 // pred_region
          _
        $region68: #{pdn_forward.1} parent=11 // pred_fallthru
          _
      $region12: #{pdn_forward.1} parent=5 // pred_fallthru
        _
      %p429 = scmp.lt.s32.totalorder %s26, 2
      // Predicated region
      $region69: #{pdn_forward.1} parent=5 // pred_check
        %p430 = pneg %p429
      $region70: #{pdn_forward.1} parent=5 // pred_check_branch
        %432 = sbr.rel (%p430) target = $region72
      $region71: #{pdn_forward.1} parent=5 // pred_region
        // Predicated region
        $region73: #{pdn_forward.1} parent=71 // pred_check
          %p433 = pneg %p46
        $region74: #{pdn_forward.1} parent=71 // pred_check_branch
          %435 = sbr.rel (%p433) target = $region76
        $region75: #{pdn_forward.1} parent=71 // pred_region
          %s436 = smul.u32 2, %s26
          %p437 = scmp.lt.s32.totalorder %s436, 3
          %s438 = scalar_select %p437, %s436, 3
          %s439 = scalar_lea.vmem %s0, %s438
          %s440 = smul.u32 2, %s26
        $region76: #{pdn_forward.1} parent=71 // pred_fallthru
          _
      $region72: #{pdn_forward.1} parent=5 // pred_fallthru
        _
      %p441 = scmp.le.s32.totalorder 1, %s26
      %p442 = scmp.lt.s32.totalorder %s26, 3
      %p443 = pnand %p441, %p442
      %p444 = pneg %p443
      // Predicated region
      $region77: #{pdn_forward.1} parent=5 // pred_check
        _
      $region78: #{pdn_forward.1} parent=5 // pred_check_branch
        %446 = sbr.rel (%p443) target = $region80
      $region79: #{pdn_forward.1} parent=5 // pred_region
        %s447 = ssub.s32 %s26, 1
        %s448 = smul.u32 2, %s31
        %p449 = scmp.lt.s32.totalorder %s448, 3
        %s450 = scalar_select %p449, %s448, 3
        %s451 = scalar_lea.vmem %s0, %s450
        %p452 = pneg %p52
        %p453 = pneg %p49
        %p454 = pneg %p73
        %p455 = pneg %p70
        %p456 = pneg %p94
        %p457 = pneg %p91
        %p458 = pneg %p115
        %p459 = pneg %p112
        %p460 = pneg %p136
        %p461 = pneg %p133
        %p462 = pneg %p157
        %p463 = pneg %p154
        %p464 = pneg %p178
        %p465 = pneg %p175
        %p466 = pneg %p199
        %p467 = pneg %p196
        %p468 = pneg %p220
        %p469 = pneg %p217
        %p470 = pneg %p241
        %p471 = pneg %p238
        %p472 = pneg %p262
        %p473 = pneg %p259
        %p474 = pneg %p283
        %p475 = pneg %p280
        %p476 = pneg %p304
        %p477 = pneg %p301
        %p478 = pneg %p325
        %p479 = pneg %p322
        %p480 = pneg %p346
        %p481 = pneg %p343
        %p482 = pneg %p372
        %p483 = pneg %p369
        %s484 = sand.u32 %s359, 1
        %s485 = scalar_lea.sflag [#allocation4], %s484
        %s486 = sand.u32 %s359, 1
        %s487 = smul.addr %s486, 2
        %s488 = scalar_lea.vmem [#allocation3], %s487
        %s489 = smul.u32 2, %s31
        %p490 = scmp.lt.s32.totalorder %s489, 3
        %s491 = scalar_select %p490, %s489, 3
        %s492 = scalar_lea.vmem %s0, %s491
        %s493 = smul.u32 2, %s31
        %s494 = smul.u32 2, %s31
        %v495 = vld [vmem:[%s492] sm:$0x3]
        %v496 = vld [vmem:[%s1] sm:$0xff]
        %v497 = vld [vmem:[%s1 + $0x8] sm:$0xff]
        %v498 = vld [vmem:[%s1 + $0x10] sm:$0xff]
        %v499 = vld [vmem:[%s1 + $0x18] sm:$0xff]
        %v500 = vld [vmem:[%s1 + $0x20] sm:$0xff]
        %v501 = vld [vmem:[%s1 + $0x28] sm:$0xff]
        %v502 = vld [vmem:[%s1 + $0x30] sm:$0xff]
        %v503 = vld [vmem:[%s1 + $0x38] sm:$0xff]
        %v504 = vld [vmem:[%s1 + $0x40] sm:$0xff]
        %v505 = vld [vmem:[%s1 + $0x48] sm:$0xff]
        %v506 = vld [vmem:[%s1 + $0x50] sm:$0xff]
        %v507 = vld [vmem:[%s1 + $0x58] sm:$0xff]
        %v508 = vld [vmem:[%s1 + $0x60] sm:$0xff]
        %v509 = vld [vmem:[%s1 + $0x68] sm:$0xff]
        %v510 = vld [vmem:[%s1 + $0x70] sm:$0xff]
        %v511 = vld [vmem:[%s1 + $0x78] sm:$0xff]
        %v512 = vld [vmem:[%s1 + $0x80] sm:$0xff]
        %v513 = vld [vmem:[%s1 + $0x88] sm:$0xff]
        %v514 = vld [vmem:[%s1 + $0x90] sm:$0xff]
        %v515 = vld [vmem:[%s1 + $0x98] sm:$0xff]
        %v516 = vld [vmem:[%s1 + $0xa0] sm:$0xff]
        %v517 = vld [vmem:[%s1 + $0xa8] sm:$0xff]
        %v518 = vld [vmem:[%s1 + $0xb0] sm:$0xff]
        %v519 = vld [vmem:[%s1 + $0xb8] sm:$0xff]
        %v520 = vld [vmem:[%s1 + $0xc0] sm:$0xff]
        %v521 = vld [vmem:[%s1 + $0xc8] sm:$0xff]
        %v522 = vld [vmem:[%s1 + $0xd0] sm:$0xff]
        %v523 = vld [vmem:[%s1 + $0xd8] sm:$0xff]
        %v524 = vld [vmem:[%s1 + $0xe0] sm:$0xff]
        %v525 = vld [vmem:[%s1 + $0xe8] sm:$0xff]
        %v526 = vld [vmem:[%s1 + $0xf0] sm:$0xff]
        %v527 = vld [vmem:[%s1 + $0xf8] sm:$0xff]
        %529 = vset.pattern.permute.xlu0 0
        %530 = vperm.xlu0 %529, %v496
        %v531 = vpop.permute.xlu0 %530
        %534 = vset.pattern.permute.xlu0 0
        %535 = vperm.xlu0 %534, %v497
        %v536 = vpop.permute.xlu0 %535
        %539 = vset.pattern.permute.xlu0 0
        %540 = vperm.xlu0 %539, %v498
        %v541 = vpop.permute.xlu0 %540
        %544 = vset.pattern.permute.xlu0 0
        %545 = vperm.xlu0 %544, %v499
        %v546 = vpop.permute.xlu0 %545
        %549 = vset.pattern.permute.xlu0 0
        %550 = vperm.xlu0 %549, %v500
        %v551 = vpop.permute.xlu0 %550
        %554 = vset.pattern.permute.xlu0 0
        %555 = vperm.xlu0 %554, %v501
        %v556 = vpop.permute.xlu0 %555
        %559 = vset.pattern.permute.xlu0 0
        %560 = vperm.xlu0 %559, %v502
        %v561 = vpop.permute.xlu0 %560
        %564 = vset.pattern.permute.xlu0 0
        %565 = vperm.xlu0 %564, %v503
        %v566 = vpop.permute.xlu0 %565
        %569 = vset.pattern.permute.xlu0 0
        %570 = vperm.xlu0 %569, %v504
        %v571 = vpop.permute.xlu0 %570
        %574 = vset.pattern.permute.xlu0 0
        %575 = vperm.xlu0 %574, %v505
        %v576 = vpop.permute.xlu0 %575
        %579 = vset.pattern.permute.xlu0 0
        %580 = vperm.xlu0 %579, %v506
        %v581 = vpop.permute.xlu0 %580
        %584 = vset.pattern.permute.xlu0 0
        %585 = vperm.xlu0 %584, %v507
        %v586 = vpop.permute.xlu0 %585
        %589 = vset.pattern.permute.xlu0 0
        %590 = vperm.xlu0 %589, %v508
        %v591 = vpop.permute.xlu0 %590
        %594 = vset.pattern.permute.xlu0 0
        %595 = vperm.xlu0 %594, %v509
        %v596 = vpop.permute.xlu0 %595
        %599 = vset.pattern.permute.xlu0 0
        %600 = vperm.xlu0 %599, %v510
        %v601 = vpop.permute.xlu0 %600
        %604 = vset.pattern.permute.xlu0 0
        %605 = vperm.xlu0 %604, %v511
        %v606 = vpop.permute.xlu0 %605
        %609 = vset.pattern.permute.xlu0 0
        %610 = vperm.xlu0 %609, %v512
        %v611 = vpop.permute.xlu0 %610
        %614 = vset.pattern.permute.xlu0 0
        %615 = vperm.xlu0 %614, %v513
        %v616 = vpop.permute.xlu0 %615
        %619 = vset.pattern.permute.xlu0 0
        %620 = vperm.xlu0 %619, %v514
        %v621 = vpop.permute.xlu0 %620
        %624 = vset.pattern.permute.xlu0 0
        %625 = vperm.xlu0 %624, %v515
        %v626 = vpop.permute.xlu0 %625
        %629 = vset.pattern.permute.xlu0 0
        %630 = vperm.xlu0 %629, %v516
        %v631 = vpop.permute.xlu0 %630
        %634 = vset.pattern.permute.xlu0 0
        %635 = vperm.xlu0 %634, %v517
        %v636 = vpop.permute.xlu0 %635
        %639 = vset.pattern.permute.xlu0 0
        %640 = vperm.xlu0 %639, %v518
        %v641 = vpop.permute.xlu0 %640
        %644 = vset.pattern.permute.xlu0 0
        %645 = vperm.xlu0 %644, %v519
        %v646 = vpop.permute.xlu0 %645
        %649 = vset.pattern.permute.xlu0 0
        %650 = vperm.xlu0 %649, %v520
        %v651 = vpop.permute.xlu0 %650
        %654 = vset.pattern.permute.xlu0 0
        %655 = vperm.xlu0 %654, %v521
        %v656 = vpop.permute.xlu0 %655
        %659 = vset.pattern.permute.xlu0 0
        %660 = vperm.xlu0 %659, %v522
        %v661 = vpop.permute.xlu0 %660
        %664 = vset.pattern.permute.xlu0 0
        %665 = vperm.xlu0 %664, %v523
        %v666 = vpop.permute.xlu0 %665
        %669 = vset.pattern.permute.xlu0 0
        %670 = vperm.xlu0 %669, %v524
        %v671 = vpop.permute.xlu0 %670
        %674 = vset.pattern.permute.xlu0 0
        %675 = vperm.xlu0 %674, %v525
        %v676 = vpop.permute.xlu0 %675
        %679 = vset.pattern.permute.xlu0 0
        %680 = vperm.xlu0 %679, %v526
        %v681 = vpop.permute.xlu0 %680
        %684 = vset.pattern.permute.xlu0 0
        %685 = vperm.xlu0 %684, %v527
        %v686 = vpop.permute.xlu0 %685
        %v689 = vlaneseq
        %v690 = vshrl.u32 %v689, 7
        %v691 = vsub.s32 0, %v690
        %v692 = vrot.slane %v495, %v691
        %v693 = vlaneseq
        %v694 = vshrl.u32 %v693, 7
        %v695 = vsub.s32 1, %v694
        %v696 = vrot.slane %v495, %v695
        %v699 = vmul.f32 %v531, %v692
        %v700 = vmul.f32 %v531, %v696
        %v701 = vmul.f32 %v536, %v692
        %v702 = vmul.f32 %v536, %v696
        %v703 = vmul.f32 %v541, %v692
        %v704 = vmul.f32 %v541, %v696
        %v705 = vmul.f32 %v546, %v692
        %v706 = vmul.f32 %v546, %v696
        %v707 = vmul.f32 %v551, %v692
        %v708 = vmul.f32 %v551, %v696
        %v709 = vmul.f32 %v556, %v692
        %v710 = vmul.f32 %v556, %v696
        %v711 = vmul.f32 %v561, %v692
        %v712 = vmul.f32 %v561, %v696
        %v713 = vmul.f32 %v566, %v692
        %v714 = vmul.f32 %v566, %v696
        %v715 = vmul.f32 %v571, %v692
        %v716 = vmul.f32 %v571, %v696
        %v717 = vmul.f32 %v576, %v692
        %v718 = vmul.f32 %v576, %v696
        %v719 = vmul.f32 %v581, %v692
        %v720 = vmul.f32 %v581, %v696
        %v721 = vmul.f32 %v586, %v692
        %v722 = vmul.f32 %v586, %v696
        %v723 = vmul.f32 %v591, %v692
        %v724 = vmul.f32 %v591, %v696
        %v725 = vmul.f32 %v596, %v692
        %v726 = vmul.f32 %v596, %v696
        %v727 = vmul.f32 %v601, %v692
        %v728 = vmul.f32 %v601, %v696
        %v729 = vmul.f32 %v606, %v692
        %v730 = vmul.f32 %v606, %v696
        %v731 = vmul.f32 %v611, %v692
        %v732 = vmul.f32 %v611, %v696
        %v733 = vmul.f32 %v616, %v692
        %v734 = vmul.f32 %v616, %v696
        %v735 = vmul.f32 %v621, %v692
        %v736 = vmul.f32 %v621, %v696
        %v737 = vmul.f32 %v626, %v692
        %v738 = vmul.f32 %v626, %v696
        %v739 = vmul.f32 %v631, %v692
        %v740 = vmul.f32 %v631, %v696
        %v741 = vmul.f32 %v636, %v692
        %v742 = vmul.f32 %v636, %v696
        %v743 = vmul.f32 %v641, %v692
        %v744 = vmul.f32 %v641, %v696
        %v745 = vmul.f32 %v646, %v692
        %v746 = vmul.f32 %v646, %v696
        %v747 = vmul.f32 %v651, %v692
        %v748 = vmul.f32 %v651, %v696
        %v749 = vmul.f32 %v656, %v692
        %v750 = vmul.f32 %v656, %v696
        %v751 = vmul.f32 %v661, %v692
        %v752 = vmul.f32 %v661, %v696
        %v753 = vmul.f32 %v666, %v692
        %v754 = vmul.f32 %v666, %v696
        %v755 = vmul.f32 %v671, %v692
        %v756 = vmul.f32 %v671, %v696
        %v757 = vmul.f32 %v676, %v692
        %v758 = vmul.f32 %v676, %v696
        %v759 = vmul.f32 %v681, %v692
        %v760 = vmul.f32 %v681, %v696
        %v761 = vmul.f32 %v686, %v692
        %v762 = vmul.f32 %v686, %v696
        %v763 = vld [vmem:[%s2] sm:$0xff]
        %v764 = vld [vmem:[%s2 + $0x8] sm:$0xff]
        %v765 = vld [vmem:[%s2 + $0x10] sm:$0xff]
        %v766 = vld [vmem:[%s2 + $0x18] sm:$0xff]
        %v767 = vld [vmem:[%s2 + $0x20] sm:$0xff]
        %v768 = vld [vmem:[%s2 + $0x28] sm:$0xff]
        %v769 = vld [vmem:[%s2 + $0x30] sm:$0xff]
        %v770 = vld [vmem:[%s2 + $0x38] sm:$0xff]
        %v771 = vld [vmem:[%s2 + $0x40] sm:$0xff]
        %v772 = vld [vmem:[%s2 + $0x48] sm:$0xff]
        %v773 = vld [vmem:[%s2 + $0x50] sm:$0xff]
        %v774 = vld [vmem:[%s2 + $0x58] sm:$0xff]
        %v775 = vld [vmem:[%s2 + $0x60] sm:$0xff]
        %v776 = vld [vmem:[%s2 + $0x68] sm:$0xff]
        %v777 = vld [vmem:[%s2 + $0x70] sm:$0xff]
        %v778 = vld [vmem:[%s2 + $0x78] sm:$0xff]
        %v779 = vld [vmem:[%s2 + $0x80] sm:$0xff]
        %v780 = vld [vmem:[%s2 + $0x88] sm:$0xff]
        %v781 = vld [vmem:[%s2 + $0x90] sm:$0xff]
        %v782 = vld [vmem:[%s2 + $0x98] sm:$0xff]
        %v783 = vld [vmem:[%s2 + $0xa0] sm:$0xff]
        %v784 = vld [vmem:[%s2 + $0xa8] sm:$0xff]
        %v785 = vld [vmem:[%s2 + $0xb0] sm:$0xff]
        %v786 = vld [vmem:[%s2 + $0xb8] sm:$0xff]
        %v787 = vld [vmem:[%s2 + $0xc0] sm:$0xff]
        %v788 = vld [vmem:[%s2 + $0xc8] sm:$0xff]
        %v789 = vld [vmem:[%s2 + $0xd0] sm:$0xff]
        %v790 = vld [vmem:[%s2 + $0xd8] sm:$0xff]
        %v791 = vld [vmem:[%s2 + $0xe0] sm:$0xff]
        %v792 = vld [vmem:[%s2 + $0xe8] sm:$0xff]
        %v793 = vld [vmem:[%s2 + $0xf0] sm:$0xff]
        %v794 = vld [vmem:[%s2 + $0xf8] sm:$0xff]
        %796 = vset.pattern.permute.xlu0 0
        %797 = vperm.xlu0 %796, %v763
        %v798 = vpop.permute.xlu0 %797
        %801 = vset.pattern.permute.xlu0 0
        %802 = vperm.xlu0 %801, %v764
        %v803 = vpop.permute.xlu0 %802
        %806 = vset.pattern.permute.xlu0 0
        %807 = vperm.xlu0 %806, %v765
        %v808 = vpop.permute.xlu0 %807
        %811 = vset.pattern.permute.xlu0 0
        %812 = vperm.xlu0 %811, %v766
        %v813 = vpop.permute.xlu0 %812
        %816 = vset.pattern.permute.xlu0 0
        %817 = vperm.xlu0 %816, %v767
        %v818 = vpop.permute.xlu0 %817
        %821 = vset.pattern.permute.xlu0 0
        %822 = vperm.xlu0 %821, %v768
        %v823 = vpop.permute.xlu0 %822
        %826 = vset.pattern.permute.xlu0 0
        %827 = vperm.xlu0 %826, %v769
        %v828 = vpop.permute.xlu0 %827
        %831 = vset.pattern.permute.xlu0 0
        %832 = vperm.xlu0 %831, %v770
        %v833 = vpop.permute.xlu0 %832
        %836 = vset.pattern.permute.xlu0 0
        %837 = vperm.xlu0 %836, %v771
        %v838 = vpop.permute.xlu0 %837
        %841 = vset.pattern.permute.xlu0 0
        %842 = vperm.xlu0 %841, %v772
        %v843 = vpop.permute.xlu0 %842
        %846 = vset.pattern.permute.xlu0 0
        %847 = vperm.xlu0 %846, %v773
        %v848 = vpop.permute.xlu0 %847
        %851 = vset.pattern.permute.xlu0 0
        %852 = vperm.xlu0 %851, %v774
        %v853 = vpop.permute.xlu0 %852
        %856 = vset.pattern.permute.xlu0 0
        %857 = vperm.xlu0 %856, %v775
        %v858 = vpop.permute.xlu0 %857
        %861 = vset.pattern.permute.xlu0 0
        %862 = vperm.xlu0 %861, %v776
        %v863 = vpop.permute.xlu0 %862
        %866 = vset.pattern.permute.xlu0 0
        %867 = vperm.xlu0 %866, %v777
        %v868 = vpop.permute.xlu0 %867
        %871 = vset.pattern.permute.xlu0 0
        %872 = vperm.xlu0 %871, %v778
        %v873 = vpop.permute.xlu0 %872
        %876 = vset.pattern.permute.xlu0 0
        %877 = vperm.xlu0 %876, %v779
        %v878 = vpop.permute.xlu0 %877
        %881 = vset.pattern.permute.xlu0 0
        %882 = vperm.xlu0 %881, %v780
        %v883 = vpop.permute.xlu0 %882
        %886 = vset.pattern.permute.xlu0 0
        %887 = vperm.xlu0 %886, %v781
        %v888 = vpop.permute.xlu0 %887
        %891 = vset.pattern.permute.xlu0 0
        %892 = vperm.xlu0 %891, %v782
        %v893 = vpop.permute.xlu0 %892
        %896 = vset.pattern.permute.xlu0 0
        %897 = vperm.xlu0 %896, %v783
        %v898 = vpop.permute.xlu0 %897
        %901 = vset.pattern.permute.xlu0 0
        %902 = vperm.xlu0 %901, %v784
        %v903 = vpop.permute.xlu0 %902
        %906 = vset.pattern.permute.xlu0 0
        %907 = vperm.xlu0 %906, %v785
        %v908 = vpop.permute.xlu0 %907
        %911 = vset.pattern.permute.xlu0 0
        %912 = vperm.xlu0 %911, %v786
        %v913 = vpop.permute.xlu0 %912
        %916 = vset.pattern.permute.xlu0 0
        %917 = vperm.xlu0 %916, %v787
        %v918 = vpop.permute.xlu0 %917
        %921 = vset.pattern.permute.xlu0 0
        %922 = vperm.xlu0 %921, %v788
        %v923 = vpop.permute.xlu0 %922
        %926 = vset.pattern.permute.xlu0 0
        %927 = vperm.xlu0 %926, %v789
        %v928 = vpop.permute.xlu0 %927
        %931 = vset.pattern.permute.xlu0 0
        %932 = vperm.xlu0 %931, %v790
        %v933 = vpop.permute.xlu0 %932
        %936 = vset.pattern.permute.xlu0 0
        %937 = vperm.xlu0 %936, %v791
        %v938 = vpop.permute.xlu0 %937
        %941 = vset.pattern.permute.xlu0 0
        %942 = vperm.xlu0 %941, %v792
        %v943 = vpop.permute.xlu0 %942
        %946 = vset.pattern.permute.xlu0 0
        %947 = vperm.xlu0 %946, %v793
        %v948 = vpop.permute.xlu0 %947
        %951 = vset.pattern.permute.xlu0 0
        %952 = vperm.xlu0 %951, %v794
        %v953 = vpop.permute.xlu0 %952
        %v955 = vadd.f32 %v699, %v798
        %v956 = vadd.f32 %v700, %v798
        %v957 = vadd.f32 %v701, %v803
        %v958 = vadd.f32 %v702, %v803
        %v959 = vadd.f32 %v703, %v808
        %v960 = vadd.f32 %v704, %v808
        %v961 = vadd.f32 %v705, %v813
        %v962 = vadd.f32 %v706, %v813
        %v963 = vadd.f32 %v707, %v818
        %v964 = vadd.f32 %v708, %v818
        %v965 = vadd.f32 %v709, %v823
        %v966 = vadd.f32 %v710, %v823
        %v967 = vadd.f32 %v711, %v828
        %v968 = vadd.f32 %v712, %v828
        %v969 = vadd.f32 %v713, %v833
        %v970 = vadd.f32 %v714, %v833
        %v971 = vadd.f32 %v715, %v838
        %v972 = vadd.f32 %v716, %v838
        %v973 = vadd.f32 %v717, %v843
        %v974 = vadd.f32 %v718, %v843
        %v975 = vadd.f32 %v719, %v848
        %v976 = vadd.f32 %v720, %v848
        %v977 = vadd.f32 %v721, %v853
        %v978 = vadd.f32 %v722, %v853
        %v979 = vadd.f32 %v723, %v858
        %v980 = vadd.f32 %v724, %v858
        %v981 = vadd.f32 %v725, %v863
        %v982 = vadd.f32 %v726, %v863
        %v983 = vadd.f32 %v727, %v868
        %v984 = vadd.f32 %v728, %v868
        %v985 = vadd.f32 %v729, %v873
        %v986 = vadd.f32 %v730, %v873
        %v987 = vadd.f32 %v731, %v878
        %v988 = vadd.f32 %v732, %v878
        %v989 = vadd.f32 %v733, %v883
        %v990 = vadd.f32 %v734, %v883
        %v991 = vadd.f32 %v735, %v888
        %v992 = vadd.f32 %v736, %v888
        %v993 = vadd.f32 %v737, %v893
        %v994 = vadd.f32 %v738, %v893
        %v995 = vadd.f32 %v739, %v898
        %v996 = vadd.f32 %v740, %v898
        %v997 = vadd.f32 %v741, %v903
        %v998 = vadd.f32 %v742, %v903
        %v999 = vadd.f32 %v743, %v908
        %v1000 = vadd.f32 %v744, %v908
        %v1001 = vadd.f32 %v745, %v913
        %v1002 = vadd.f32 %v746, %v913
        %v1003 = vadd.f32 %v747, %v918
        %v1004 = vadd.f32 %v748, %v918
        %v1005 = vadd.f32 %v749, %v923
        %v1006 = vadd.f32 %v750, %v923
        %v1007 = vadd.f32 %v751, %v928
        %v1008 = vadd.f32 %v752, %v928
        %v1009 = vadd.f32 %v753, %v933
        %v1010 = vadd.f32 %v754, %v933
        %v1011 = vadd.f32 %v755, %v938
        %v1012 = vadd.f32 %v756, %v938
        %v1013 = vadd.f32 %v757, %v943
        %v1014 = vadd.f32 %v758, %v943
        %v1015 = vadd.f32 %v759, %v948
        %v1016 = vadd.f32 %v760, %v948
        %v1017 = vadd.f32 %v761, %v953
        %v1018 = vadd.f32 %v762, %v953
        %v1019 = vmax.f32 %v955, 0.0
        %v1020 = vmax.f32 %v956, 0.0
        %v1021 = vmax.f32 %v957, 0.0
        %v1022 = vmax.f32 %v958, 0.0
        %v1023 = vmax.f32 %v959, 0.0
        %v1024 = vmax.f32 %v960, 0.0
        %v1025 = vmax.f32 %v961, 0.0
        %v1026 = vmax.f32 %v962, 0.0
        %v1027 = vmax.f32 %v963, 0.0
        %v1028 = vmax.f32 %v964, 0.0
        %v1029 = vmax.f32 %v965, 0.0
        %v1030 = vmax.f32 %v966, 0.0
        %v1031 = vmax.f32 %v967, 0.0
        %v1032 = vmax.f32 %v968, 0.0
        %v1033 = vmax.f32 %v969, 0.0
        %v1034 = vmax.f32 %v970, 0.0
        %v1035 = vmax.f32 %v971, 0.0
        %v1036 = vmax.f32 %v972, 0.0
        %v1037 = vmax.f32 %v973, 0.0
        %v1038 = vmax.f32 %v974, 0.0
        %v1039 = vmax.f32 %v975, 0.0
        %v1040 = vmax.f32 %v976, 0.0
        %v1041 = vmax.f32 %v977, 0.0
        %v1042 = vmax.f32 %v978, 0.0
        %v1043 = vmax.f32 %v979, 0.0
        %v1044 = vmax.f32 %v980, 0.0
        %v1045 = vmax.f32 %v981, 0.0
        %v1046 = vmax.f32 %v982, 0.0
        %v1047 = vmax.f32 %v983, 0.0
        %v1048 = vmax.f32 %v984, 0.0
        %v1049 = vmax.f32 %v985, 0.0
        %v1050 = vmax.f32 %v986, 0.0
        %v1051 = vmax.f32 %v987, 0.0
        %v1052 = vmax.f32 %v988, 0.0
        %v1053 = vmax.f32 %v989, 0.0
        %v1054 = vmax.f32 %v990, 0.0
        %v1055 = vmax.f32 %v991, 0.0
        %v1056 = vmax.f32 %v992, 0.0
        %v1057 = vmax.f32 %v993, 0.0
        %v1058 = vmax.f32 %v994, 0.0
        %v1059 = vmax.f32 %v995, 0.0
        %v1060 = vmax.f32 %v996, 0.0
        %v1061 = vmax.f32 %v997, 0.0
        %v1062 = vmax.f32 %v998, 0.0
        %v1063 = vmax.f32 %v999, 0.0
        %v1064 = vmax.f32 %v1000, 0.0
        %v1065 = vmax.f32 %v1001, 0.0
        %v1066 = vmax.f32 %v1002, 0.0
        %v1067 = vmax.f32 %v1003, 0.0
        %v1068 = vmax.f32 %v1004, 0.0
        %v1069 = vmax.f32 %v1005, 0.0
        %v1070 = vmax.f32 %v1006, 0.0
        %v1071 = vmax.f32 %v1007, 0.0
        %v1072 = vmax.f32 %v1008, 0.0
        %v1073 = vmax.f32 %v1009, 0.0
        %v1074 = vmax.f32 %v1010, 0.0
        %v1075 = vmax.f32 %v1011, 0.0
        %v1076 = vmax.f32 %v1012, 0.0
        %v1077 = vmax.f32 %v1013, 0.0
        %v1078 = vmax.f32 %v1014, 0.0
        %v1079 = vmax.f32 %v1015, 0.0
        %v1080 = vmax.f32 %v1016, 0.0
        %v1081 = vmax.f32 %v1017, 0.0
        %v1082 = vmax.f32 %v1018, 0.0
        %v1083 = vld [vmem:[%s3] sm:$0xff]
        %v1084 = vld [vmem:[%s3 + $0x8] sm:$0xff]
        %v1085 = vld [vmem:[%s3 + $0x10] sm:$0xff]
        %v1086 = vld [vmem:[%s3 + $0x18] sm:$0xff]
        %v1087 = vld [vmem:[%s3 + $0x20] sm:$0xff]
        %v1088 = vld [vmem:[%s3 + $0x28] sm:$0xff]
        %v1089 = vld [vmem:[%s3 + $0x30] sm:$0xff]
        %v1090 = vld [vmem:[%s3 + $0x38] sm:$0xff]
        %v1091 = vld [vmem:[%s3 + $0x40] sm:$0xff]
        %v1092 = vld [vmem:[%s3 + $0x48] sm:$0xff]
        %v1093 = vld [vmem:[%s3 + $0x50] sm:$0xff]
        %v1094 = vld [vmem:[%s3 + $0x58] sm:$0xff]
        %v1095 = vld [vmem:[%s3 + $0x60] sm:$0xff]
        %v1096 = vld [vmem:[%s3 + $0x68] sm:$0xff]
        %v1097 = vld [vmem:[%s3 + $0x70] sm:$0xff]
        %v1098 = vld [vmem:[%s3 + $0x78] sm:$0xff]
        %v1099 = vld [vmem:[%s3 + $0x80] sm:$0xff]
        %v1100 = vld [vmem:[%s3 + $0x88] sm:$0xff]
        %v1101 = vld [vmem:[%s3 + $0x90] sm:$0xff]
        %v1102 = vld [vmem:[%s3 + $0x98] sm:$0xff]
        %v1103 = vld [vmem:[%s3 + $0xa0] sm:$0xff]
        %v1104 = vld [vmem:[%s3 + $0xa8] sm:$0xff]
        %v1105 = vld [vmem:[%s3 + $0xb0] sm:$0xff]
        %v1106 = vld [vmem:[%s3 + $0xb8] sm:$0xff]
        %v1107 = vld [vmem:[%s3 + $0xc0] sm:$0xff]
        %v1108 = vld [vmem:[%s3 + $0xc8] sm:$0xff]
        %v1109 = vld [vmem:[%s3 + $0xd0] sm:$0xff]
        %v1110 = vld [vmem:[%s3 + $0xd8] sm:$0xff]
        %v1111 = vld [vmem:[%s3 + $0xe0] sm:$0xff]
        %v1112 = vld [vmem:[%s3 + $0xe8] sm:$0xff]
        %v1113 = vld [vmem:[%s3 + $0xf0] sm:$0xff]
        %v1114 = vld [vmem:[%s3 + $0xf8] sm:$0xff]
        %v1115 = vld [vmem:[%s3 + $0x100] sm:$0xff]
        %v1116 = vld [vmem:[%s3 + $0x108] sm:$0xff]
        %v1117 = vld [vmem:[%s3 + $0x110] sm:$0xff]
        %v1118 = vld [vmem:[%s3 + $0x118] sm:$0xff]
        %v1119 = vld [vmem:[%s3 + $0x120] sm:$0xff]
        %v1120 = vld [vmem:[%s3 + $0x128] sm:$0xff]
        %v1121 = vld [vmem:[%s3 + $0x130] sm:$0xff]
        %v1122 = vld [vmem:[%s3 + $0x138] sm:$0xff]
        %v1123 = vld [vmem:[%s3 + $0x140] sm:$0xff]
        %v1124 = vld [vmem:[%s3 + $0x148] sm:$0xff]
        %v1125 = vld [vmem:[%s3 + $0x150] sm:$0xff]
        %v1126 = vld [vmem:[%s3 + $0x158] sm:$0xff]
        %v1127 = vld [vmem:[%s3 + $0x160] sm:$0xff]
        %v1128 = vld [vmem:[%s3 + $0x168] sm:$0xff]
        %v1129 = vld [vmem:[%s3 + $0x170] sm:$0xff]
        %v1130 = vld [vmem:[%s3 + $0x178] sm:$0xff]
        %v1131 = vld [vmem:[%s3 + $0x180] sm:$0xff]
        %v1132 = vld [vmem:[%s3 + $0x188] sm:$0xff]
        %v1133 = vld [vmem:[%s3 + $0x190] sm:$0xff]
        %v1134 = vld [vmem:[%s3 + $0x198] sm:$0xff]
        %v1135 = vld [vmem:[%s3 + $0x1a0] sm:$0xff]
        %v1136 = vld [vmem:[%s3 + $0x1a8] sm:$0xff]
        %v1137 = vld [vmem:[%s3 + $0x1b0] sm:$0xff]
        %v1138 = vld [vmem:[%s3 + $0x1b8] sm:$0xff]
        %v1139 = vld [vmem:[%s3 + $0x1c0] sm:$0xff]
        %v1140 = vld [vmem:[%s3 + $0x1c8] sm:$0xff]
        %v1141 = vld [vmem:[%s3 + $0x1d0] sm:$0xff]
        %v1142 = vld [vmem:[%s3 + $0x1d8] sm:$0xff]
        %v1143 = vld [vmem:[%s3 + $0x1e0] sm:$0xff]
        %v1144 = vld [vmem:[%s3 + $0x1e8] sm:$0xff]
        %v1145 = vld [vmem:[%s3 + $0x1f0] sm:$0xff]
        %v1146 = vld [vmem:[%s3 + $0x1f8] sm:$0xff]
        %v1147 = vld [vmem:[%s4] sm:$0xff]
        %v1148 = vld [vmem:[%s4 + $0x8] sm:$0xff]
        %v1149 = vld [vmem:[%s4 + $0x10] sm:$0xff]
        %v1150 = vld [vmem:[%s4 + $0x18] sm:$0xff]
        %v1151 = vld [vmem:[%s4 + $0x20] sm:$0xff]
        %v1152 = vld [vmem:[%s4 + $0x28] sm:$0xff]
        %v1153 = vld [vmem:[%s4 + $0x30] sm:$0xff]
        %v1154 = vld [vmem:[%s4 + $0x38] sm:$0xff]
        %v1155 = vld [vmem:[%s4 + $0x40] sm:$0xff]
        %v1156 = vld [vmem:[%s4 + $0x48] sm:$0xff]
        %v1157 = vld [vmem:[%s4 + $0x50] sm:$0xff]
        %v1158 = vld [vmem:[%s4 + $0x58] sm:$0xff]
        %v1159 = vld [vmem:[%s4 + $0x60] sm:$0xff]
        %v1160 = vld [vmem:[%s4 + $0x68] sm:$0xff]
        %v1161 = vld [vmem:[%s4 + $0x70] sm:$0xff]
        %v1162 = vld [vmem:[%s4 + $0x78] sm:$0xff]
        %v1163 = vld [vmem:[%s4 + $0x80] sm:$0xff]
        %v1164 = vld [vmem:[%s4 + $0x88] sm:$0xff]
        %v1165 = vld [vmem:[%s4 + $0x90] sm:$0xff]
        %v1166 = vld [vmem:[%s4 + $0x98] sm:$0xff]
        %v1167 = vld [vmem:[%s4 + $0xa0] sm:$0xff]
        %v1168 = vld [vmem:[%s4 + $0xa8] sm:$0xff]
        %v1169 = vld [vmem:[%s4 + $0xb0] sm:$0xff]
        %v1170 = vld [vmem:[%s4 + $0xb8] sm:$0xff]
        %v1171 = vld [vmem:[%s4 + $0xc0] sm:$0xff]
        %v1172 = vld [vmem:[%s4 + $0xc8] sm:$0xff]
        %v1173 = vld [vmem:[%s4 + $0xd0] sm:$0xff]
        %v1174 = vld [vmem:[%s4 + $0xd8] sm:$0xff]
        %v1175 = vld [vmem:[%s4 + $0xe0] sm:$0xff]
        %v1176 = vld [vmem:[%s4 + $0xe8] sm:$0xff]
        %v1177 = vld [vmem:[%s4 + $0xf0] sm:$0xff]
        %v1178 = vld [vmem:[%s4 + $0xf8] sm:$0xff]
        %1180 = vset.pattern.permute.xlu0 0
        %1181 = vperm.xlu0 %1180, %v1147
        %v1182 = vpop.permute.xlu0 %1181
        %1185 = vset.pattern.permute.xlu0 0
        %1186 = vperm.xlu0 %1185, %v1148
        %v1187 = vpop.permute.xlu0 %1186
        %1190 = vset.pattern.permute.xlu0 0
        %1191 = vperm.xlu0 %1190, %v1149
        %v1192 = vpop.permute.xlu0 %1191
        %1195 = vset.pattern.permute.xlu0 0
        %1196 = vperm.xlu0 %1195, %v1150
        %v1197 = vpop.permute.xlu0 %1196
        %1200 = vset.pattern.permute.xlu0 0
        %1201 = vperm.xlu0 %1200, %v1151
        %v1202 = vpop.permute.xlu0 %1201
        %1205 = vset.pattern.permute.xlu0 0
        %1206 = vperm.xlu0 %1205, %v1152
        %v1207 = vpop.permute.xlu0 %1206
        %1210 = vset.pattern.permute.xlu0 0
        %1211 = vperm.xlu0 %1210, %v1153
        %v1212 = vpop.permute.xlu0 %1211
        %1215 = vset.pattern.permute.xlu0 0
        %1216 = vperm.xlu0 %1215, %v1154
        %v1217 = vpop.permute.xlu0 %1216
        %1220 = vset.pattern.permute.xlu0 0
        %1221 = vperm.xlu0 %1220, %v1155
        %v1222 = vpop.permute.xlu0 %1221
        %1225 = vset.pattern.permute.xlu0 0
        %1226 = vperm.xlu0 %1225, %v1156
        %v1227 = vpop.permute.xlu0 %1226
        %1230 = vset.pattern.permute.xlu0 0
        %1231 = vperm.xlu0 %1230, %v1157
        %v1232 = vpop.permute.xlu0 %1231
        %1235 = vset.pattern.permute.xlu0 0
        %1236 = vperm.xlu0 %1235, %v1158
        %v1237 = vpop.permute.xlu0 %1236
        %1240 = vset.pattern.permute.xlu0 0
        %1241 = vperm.xlu0 %1240, %v1159
        %v1242 = vpop.permute.xlu0 %1241
        %1245 = vset.pattern.permute.xlu0 0
        %1246 = vperm.xlu0 %1245, %v1160
        %v1247 = vpop.permute.xlu0 %1246
        %1250 = vset.pattern.permute.xlu0 0
        %1251 = vperm.xlu0 %1250, %v1161
        %v1252 = vpop.permute.xlu0 %1251
        %1255 = vset.pattern.permute.xlu0 0
        %1256 = vperm.xlu0 %1255, %v1162
        %v1257 = vpop.permute.xlu0 %1256
        %1260 = vset.pattern.permute.xlu0 0
        %1261 = vperm.xlu0 %1260, %v1163
        %v1262 = vpop.permute.xlu0 %1261
        %1265 = vset.pattern.permute.xlu0 0
        %1266 = vperm.xlu0 %1265, %v1164
        %v1267 = vpop.permute.xlu0 %1266
        %1270 = vset.pattern.permute.xlu0 0
        %1271 = vperm.xlu0 %1270, %v1165
        %v1272 = vpop.permute.xlu0 %1271
        %1275 = vset.pattern.permute.xlu0 0
        %1276 = vperm.xlu0 %1275, %v1166
        %v1277 = vpop.permute.xlu0 %1276
        %1280 = vset.pattern.permute.xlu0 0
        %1281 = vperm.xlu0 %1280, %v1167
        %v1282 = vpop.permute.xlu0 %1281
        %1285 = vset.pattern.permute.xlu0 0
        %1286 = vperm.xlu0 %1285, %v1168
        %v1287 = vpop.permute.xlu0 %1286
        %1290 = vset.pattern.permute.xlu0 0
        %1291 = vperm.xlu0 %1290, %v1169
        %v1292 = vpop.permute.xlu0 %1291
        %1295 = vset.pattern.permute.xlu0 0
        %1296 = vperm.xlu0 %1295, %v1170
        %v1297 = vpop.permute.xlu0 %1296
        %1300 = vset.pattern.permute.xlu0 0
        %1301 = vperm.xlu0 %1300, %v1171
        %v1302 = vpop.permute.xlu0 %1301
        %1305 = vset.pattern.permute.xlu0 0
        %1306 = vperm.xlu0 %1305, %v1172
        %v1307 = vpop.permute.xlu0 %1306
        %1310 = vset.pattern.permute.xlu0 0
        %1311 = vperm.xlu0 %1310, %v1173
        %v1312 = vpop.permute.xlu0 %1311
        %1315 = vset.pattern.permute.xlu0 0
        %1316 = vperm.xlu0 %1315, %v1174
        %v1317 = vpop.permute.xlu0 %1316
        %1320 = vset.pattern.permute.xlu0 0
        %1321 = vperm.xlu0 %1320, %v1175
        %v1322 = vpop.permute.xlu0 %1321
        %1325 = vset.pattern.permute.xlu0 0
        %1326 = vperm.xlu0 %1325, %v1176
        %v1327 = vpop.permute.xlu0 %1326
        %1330 = vset.pattern.permute.xlu0 0
        %1331 = vperm.xlu0 %1330, %v1177
        %v1332 = vpop.permute.xlu0 %1331
        %1335 = vset.pattern.permute.xlu0 0
        %1336 = vperm.xlu0 %1335, %v1178
        %v1337 = vpop.permute.xlu0 %1336
        %1339 = vmatprep.subr.mxu0 %v1020
        %1340 = vmatpush1.msra.mxu0 %v1019
        %1341 = vmatprep.subr.mxu0 %v1022
        %1342 = vmatpush1.msra.mxu0 %v1021
        %1343 = vmatprep.subr.mxu0 %v1024
        %1344 = vmatpush1.msra.mxu0 %v1023
        %1345 = vmatprep.subr.mxu0 %v1026
        %1346 = vmatpush1.msra.mxu0 %v1025
        %1347 = vmatprep.subr.mxu0 %v1028
        %1348 = vmatpush1.msra.mxu0 %v1027
        %1349 = vmatprep.subr.mxu0 %v1030
        %1350 = vmatpush1.msra.mxu0 %v1029
        %1351 = vmatprep.subr.mxu0 %v1032
        %1352 = vmatpush1.msra.mxu0 %v1031
        %1353 = vmatprep.subr.mxu0 %v1034
        %1354 = vmatpush1.msra.mxu0 %v1033
        %1355 = vmatprep.subr.mxu0 %v1036
        %1356 = vmatpush1.msra.mxu0 %v1035
        %1357 = vmatprep.subr.mxu0 %v1038
        %1358 = vmatpush1.msra.mxu0 %v1037
        %1359 = vmatprep.subr.mxu0 %v1040
        %1360 = vmatpush1.msra.mxu0 %v1039
        %1361 = vmatprep.subr.mxu0 %v1042
        %1362 = vmatpush1.msra.mxu0 %v1041
        %1363 = vmatprep.subr.mxu0 %v1044
        %1364 = vmatpush1.msra.mxu0 %v1043
        %1365 = vmatprep.subr.mxu0 %v1046
        %1366 = vmatpush1.msra.mxu0 %v1045
        %1367 = vmatprep.subr.mxu0 %v1048
        %1368 = vmatpush1.msra.mxu0 %v1047
        %1369 = vmatprep.subr.mxu0 %v1050
        %1370 = vmatpush1.msra.mxu0 %v1049
        %1371 = vmatprep.subr.mxu0 %v1052
        %1372 = vmatpush1.msra.mxu0 %v1051
        %1373 = vmatprep.subr.mxu0 %v1054
        %1374 = vmatpush1.msra.mxu0 %v1053
        %1375 = vmatprep.subr.mxu0 %v1056
        %1376 = vmatpush1.msra.mxu0 %v1055
        %1377 = vmatprep.subr.mxu0 %v1058
        %1378 = vmatpush1.msra.mxu0 %v1057
        %1379 = vmatprep.subr.mxu0 %v1060
        %1380 = vmatpush1.msra.mxu0 %v1059
        %1381 = vmatprep.subr.mxu0 %v1062
        %1382 = vmatpush1.msra.mxu0 %v1061
        %1383 = vmatprep.subr.mxu0 %v1064
        %1384 = vmatpush1.msra.mxu0 %v1063
        %1385 = vmatprep.subr.mxu0 %v1066
        %1386 = vmatpush1.msra.mxu0 %v1065
        %1387 = vmatprep.subr.mxu0 %v1068
        %1388 = vmatpush1.msra.mxu0 %v1067
        %1389 = vmatprep.subr.mxu0 %v1070
        %1390 = vmatpush1.msra.mxu0 %v1069
        %1391 = vmatprep.subr.mxu0 %v1072
        %1392 = vmatpush1.msra.mxu0 %v1071
        %1393 = vmatprep.subr.mxu0 %v1074
        %1394 = vmatpush1.msra.mxu0 %v1073
        %1395 = vmatprep.subr.mxu0 %v1076
        %1396 = vmatpush1.msra.mxu0 %v1075
        %1397 = vmatprep.subr.mxu0 %v1078
        %1398 = vmatpush1.msra.mxu0 %v1077
        %1399 = vmatprep.subr.mxu0 %v1080
        %1400 = vmatpush1.msra.mxu0 %v1079
        %1401 = vmatprep.subr.mxu0 %v1082
        %1402 = vmatpush1.msra.mxu0 %v1081
        %1403 = vmatprep.mubr.f32.mxu0 %v1084
        %1404 = vmatmul.mubr.f32.gmra.mrb[0].mxu0 %v1083
        %v1405 = vpop.f32.mrb[0].mxu0
        %v1406 = vadd.f32 %v1182, %v1405
        %v1407 = vpop.f32.mrb[0].mxu0
        %v1408 = vadd.f32 %v1182, %v1407
        %1409 = vmatprep.mubr.f32.mxu0 %v1086
        %1410 = vmatmul.mubr.f32.gmra.mrb[0].mxu0 %v1085
        %v1411 = vpop.f32.mrb[0].mxu0
        %v1412 = vadd.f32 %v1187, %v1411
        %v1413 = vpop.f32.mrb[0].mxu0
        %v1414 = vadd.f32 %v1187, %v1413
        %1415 = vmatprep.mubr.f32.mxu0 %v1088
        %1416 = vmatmul.mubr.f32.gmra.mrb[0].mxu0 %v1087
        %v1417 = vpop.f32.mrb[0].mxu0
        %v1418 = vadd.f32 %v1192, %v1417
        %v1419 = vpop.f32.mrb[0].mxu0
        %v1420 = vadd.f32 %v1192, %v1419
        %1421 = vmatprep.mubr.f32.mxu0 %v1090
        %1422 = vmatmul.mubr.f32.gmra.mrb[0].mxu0 %v1089
        %v1423 = vpop.f32.mrb[0].mxu0
        %v1424 = vadd.f32 %v1197, %v1423
        %v1425 = vpop.f32.mrb[0].mxu0
        %v1426 = vadd.f32 %v1197, %v1425
        %1427 = vmatprep.mubr.f32.mxu0 %v1092
        %1428 = vmatmul.mubr.f32.gmra.mrb[0].mxu0 %v1091
        %v1429 = vpop.f32.mrb[0].mxu0
        %v1430 = vadd.f32 %v1202, %v1429
        %v1431 = vpop.f32.mrb[0].mxu0
        %v1432 = vadd.f32 %v1202, %v1431
        %1433 = vmatprep.mubr.f32.mxu0 %v1094
        %1434 = vmatmul.mubr.f32.gmra.mrb[0].mxu0 %v1093
        %v1435 = vpop.f32.mrb[0].mxu0
        %v1436 = vadd.f32 %v1207, %v1435
        %v1437 = vpop.f32.mrb[0].mxu0
        %v1438 = vadd.f32 %v1207, %v1437
        %1439 = vmatprep.mubr.f32.mxu0 %v1096
        %1440 = vmatmul.mubr.f32.gmra.mrb[0].mxu0 %v1095
        %v1441 = vpop.f32.mrb[0].mxu0
        %v1442 = vadd.f32 %v1212, %v1441
        %v1443 = vpop.f32.mrb[0].mxu0
        %v1444 = vadd.f32 %v1212, %v1443
        %1445 = vmatprep.mubr.f32.mxu0 %v1098
        %1446 = vmatmul.mubr.f32.gmra.mrb[0].mxu0 %v1097
        %v1447 = vpop.f32.mrb[0].mxu0
        %v1448 = vadd.f32 %v1217, %v1447
        %v1449 = vpop.f32.mrb[0].mxu0
        %v1450 = vadd.f32 %v1217, %v1449
        %1451 = vmatprep.mubr.f32.mxu0 %v1100
        %1452 = vmatmul.mubr.f32.gmra.mrb[0].mxu0 %v1099
        %v1453 = vpop.f32.mrb[0].mxu0
        %v1454 = vadd.f32 %v1222, %v1453
        %v1455 = vpop.f32.mrb[0].mxu0
        %v1456 = vadd.f32 %v1222, %v1455
        %1457 = vmatprep.mubr.f32.mxu0 %v1102
        %1458 = vmatmul.mubr.f32.gmra.mrb[0].mxu0 %v1101
        %v1459 = vpop.f32.mrb[0].mxu0
        %v1460 = vadd.f32 %v1227, %v1459
        %v1461 = vpop.f32.mrb[0].mxu0
        %v1462 = vadd.f32 %v1227, %v1461
        %1463 = vmatprep.mubr.f32.mxu0 %v1104
        %1464 = vmatmul.mubr.f32.gmra.mrb[0].mxu0 %v1103
        %v1465 = vpop.f32.mrb[0].mxu0
        %v1466 = vadd.f32 %v1232, %v1465
        %v1467 = vpop.f32.mrb[0].mxu0
        %v1468 = vadd.f32 %v1232, %v1467
        %1469 = vmatprep.mubr.f32.mxu0 %v1106
        %1470 = vmatmul.mubr.f32.gmra.mrb[0].mxu0 %v1105
        %v1471 = vpop.f32.mrb[0].mxu0
        %v1472 = vadd.f32 %v1237, %v1471
        %v1473 = vpop.f32.mrb[0].mxu0
        %v1474 = vadd.f32 %v1237, %v1473
        %1475 = vmatprep.mubr.f32.mxu0 %v1108
        %1476 = vmatmul.mubr.f32.gmra.mrb[0].mxu0 %v1107
        %v1477 = vpop.f32.mrb[0].mxu0
        %v1478 = vadd.f32 %v1242, %v1477
        %v1479 = vpop.f32.mrb[0].mxu0
        %v1480 = vadd.f32 %v1242, %v1479
        %1481 = vmatprep.mubr.f32.mxu0 %v1110
        %1482 = vmatmul.mubr.f32.gmra.mrb[0].mxu0 %v1109
        %v1483 = vpop.f32.mrb[0].mxu0
        %v1484 = vadd.f32 %v1247, %v1483
        %v1485 = vpop.f32.mrb[0].mxu0
        %v1486 = vadd.f32 %v1247, %v1485
        %1487 = vmatprep.mubr.f32.mxu0 %v1112
        %1488 = vmatmul.mubr.f32.gmra.mrb[0].mxu0 %v1111
        %v1489 = vpop.f32.mrb[0].mxu0
        %v1490 = vadd.f32 %v1252, %v1489
        %v1491 = vpop.f32.mrb[0].mxu0
        %v1492 = vadd.f32 %v1252, %v1491
        %1493 = vmatprep.mubr.f32.mxu0 %v1114
        %1494 = vmatmul.mubr.f32.gmra.mrb[0].mxu0 %v1113
        %v1495 = vpop.f32.mrb[0].mxu0
        %v1496 = vadd.f32 %v1257, %v1495
        %v1497 = vpop.f32.mrb[0].mxu0
        %v1498 = vadd.f32 %v1257, %v1497
        %1499 = vmatprep.mubr.f32.mxu0 %v1116
        %1500 = vmatmul.mubr.f32.gmra.mrb[0].mxu0 %v1115
        %v1501 = vpop.f32.mrb[0].mxu0
        %v1502 = vadd.f32 %v1262, %v1501
        %v1503 = vpop.f32.mrb[0].mxu0
        %v1504 = vadd.f32 %v1262, %v1503
        %1505 = vmatprep.mubr.f32.mxu0 %v1118
        %1506 = vmatmul.mubr.f32.gmra.mrb[0].mxu0 %v1117
        %v1507 = vpop.f32.mrb[0].mxu0
        %v1508 = vadd.f32 %v1267, %v1507
        %v1509 = vpop.f32.mrb[0].mxu0
        %v1510 = vadd.f32 %v1267, %v1509
        %1511 = vmatprep.mubr.f32.mxu0 %v1120
        %1512 = vmatmul.mubr.f32.gmra.mrb[0].mxu0 %v1119
        %v1513 = vpop.f32.mrb[0].mxu0
        %v1514 = vadd.f32 %v1272, %v1513
        %v1515 = vpop.f32.mrb[0].mxu0
        %v1516 = vadd.f32 %v1272, %v1515
        %1517 = vmatprep.mubr.f32.mxu0 %v1122
        %1518 = vmatmul.mubr.f32.gmra.mrb[0].mxu0 %v1121
        %v1519 = vpop.f32.mrb[0].mxu0
        %v1520 = vadd.f32 %v1277, %v1519
        %v1521 = vpop.f32.mrb[0].mxu0
        %v1522 = vadd.f32 %v1277, %v1521
        %1523 = vmatprep.mubr.f32.mxu0 %v1124
        %1524 = vmatmul.mubr.f32.gmra.mrb[0].mxu0 %v1123
        %v1525 = vpop.f32.mrb[0].mxu0
        %v1526 = vadd.f32 %v1282, %v1525
        %v1527 = vpop.f32.mrb[0].mxu0
        %v1528 = vadd.f32 %v1282, %v1527
        %1529 = vmatprep.mubr.f32.mxu0 %v1126
        %1530 = vmatmul.mubr.f32.gmra.mrb[0].mxu0 %v1125
        %v1531 = vpop.f32.mrb[0].mxu0
        %v1532 = vadd.f32 %v1287, %v1531
        %v1533 = vpop.f32.mrb[0].mxu0
        %v1534 = vadd.f32 %v1287, %v1533
        %1535 = vmatprep.mubr.f32.mxu0 %v1128
        %1536 = vmatmul.mubr.f32.gmra.mrb[0].mxu0 %v1127
        %v1537 = vpop.f32.mrb[0].mxu0
        %v1538 = vadd.f32 %v1292, %v1537
        %v1539 = vpop.f32.mrb[0].mxu0
        %v1540 = vadd.f32 %v1292, %v1539
        %1541 = vmatprep.mubr.f32.mxu0 %v1130
        %1542 = vmatmul.mubr.f32.gmra.mrb[0].mxu0 %v1129
        %v1543 = vpop.f32.mrb[0].mxu0
        %v1544 = vadd.f32 %v1297, %v1543
        %v1545 = vpop.f32.mrb[0].mxu0
        %v1546 = vadd.f32 %v1297, %v1545
        %1547 = vmatprep.mubr.f32.mxu0 %v1132
        %1548 = vmatmul.mubr.f32.gmra.mrb[0].mxu0 %v1131
        %v1549 = vpop.f32.mrb[0].mxu0
        %v1550 = vadd.f32 %v1302, %v1549
        %v1551 = vpop.f32.mrb[0].mxu0
        %v1552 = vadd.f32 %v1302, %v1551
        %1553 = vmatprep.mubr.f32.mxu0 %v1134
        %1554 = vmatmul.mubr.f32.gmra.mrb[0].mxu0 %v1133
        %v1555 = vpop.f32.mrb[0].mxu0
        %v1556 = vadd.f32 %v1307, %v1555
        %v1557 = vpop.f32.mrb[0].mxu0
        %v1558 = vadd.f32 %v1307, %v1557
        %1559 = vmatprep.mubr.f32.mxu0 %v1136
        %1560 = vmatmul.mubr.f32.gmra.mrb[0].mxu0 %v1135
        %v1561 = vpop.f32.mrb[0].mxu0
        %v1562 = vadd.f32 %v1312, %v1561
        %v1563 = vpop.f32.mrb[0].mxu0
        %v1564 = vadd.f32 %v1312, %v1563
        %1565 = vmatprep.mubr.f32.mxu0 %v1138
        %1566 = vmatmul.mubr.f32.gmra.mrb[0].mxu0 %v1137
        %v1567 = vpop.f32.mrb[0].mxu0
        %v1568 = vadd.f32 %v1317, %v1567
        %v1569 = vpop.f32.mrb[0].mxu0
        %v1570 = vadd.f32 %v1317, %v1569
        %1571 = vmatprep.mubr.f32.mxu0 %v1140
        %1572 = vmatmul.mubr.f32.gmra.mrb[0].mxu0 %v1139
        %v1573 = vpop.f32.mrb[0].mxu0
        %v1574 = vadd.f32 %v1322, %v1573
        %v1575 = vpop.f32.mrb[0].mxu0
        %v1576 = vadd.f32 %v1322, %v1575
        %1577 = vmatprep.mubr.f32.mxu0 %v1142
        %1578 = vmatmul.mubr.f32.gmra.mrb[0].mxu0 %v1141
        %v1579 = vpop.f32.mrb[0].mxu0
        %v1580 = vadd.f32 %v1327, %v1579
        %v1581 = vpop.f32.mrb[0].mxu0
        %v1582 = vadd.f32 %v1327, %v1581
        %1583 = vmatprep.mubr.f32.mxu0 %v1144
        %1584 = vmatmul.mubr.f32.gmra.mrb[0].mxu0 %v1143
        %v1585 = vpop.f32.mrb[0].mxu0
        %v1586 = vadd.f32 %v1332, %v1585
        %v1587 = vpop.f32.mrb[0].mxu0
        %v1588 = vadd.f32 %v1332, %v1587
        %1589 = vmatprep.mubr.f32.mxu0 %v1146
        %1590 = vmatmul.mubr.f32.gmra.mrb[0].mxu0 %v1145
        %v1591 = vpop.f32.mrb[0].mxu0
        %v1592 = vadd.f32 %v1337, %v1591
        %v1593 = vpop.f32.mrb[0].mxu0
        %v1594 = vadd.f32 %v1337, %v1593
        %1595 = vdwg.mxu0
        %v1596 = vmax.f32 %v1406, 0.0
        %v1597 = vmax.f32 %v1408, 0.0
        %v1598 = vmax.f32 %v1412, 0.0
        %v1599 = vmax.f32 %v1414, 0.0
        %v1600 = vmax.f32 %v1418, 0.0
        %v1601 = vmax.f32 %v1420, 0.0
        %v1602 = vmax.f32 %v1424, 0.0
        %v1603 = vmax.f32 %v1426, 0.0
        %v1604 = vmax.f32 %v1430, 0.0
        %v1605 = vmax.f32 %v1432, 0.0
        %v1606 = vmax.f32 %v1436, 0.0
        %v1607 = vmax.f32 %v1438, 0.0
        %v1608 = vmax.f32 %v1442, 0.0
        %v1609 = vmax.f32 %v1444, 0.0
        %v1610 = vmax.f32 %v1448, 0.0
        %v1611 = vmax.f32 %v1450, 0.0
        %v1612 = vmax.f32 %v1454, 0.0
        %v1613 = vmax.f32 %v1456, 0.0
        %v1614 = vmax.f32 %v1460, 0.0
        %v1615 = vmax.f32 %v1462, 0.0
        %v1616 = vmax.f32 %v1466, 0.0
        %v1617 = vmax.f32 %v1468, 0.0
        %v1618 = vmax.f32 %v1472, 0.0
        %v1619 = vmax.f32 %v1474, 0.0
        %v1620 = vmax.f32 %v1478, 0.0
        %v1621 = vmax.f32 %v1480, 0.0
        %v1622 = vmax.f32 %v1484, 0.0
        %v1623 = vmax.f32 %v1486, 0.0
        %v1624 = vmax.f32 %v1490, 0.0
        %v1625 = vmax.f32 %v1492, 0.0
        %v1626 = vmax.f32 %v1496, 0.0
        %v1627 = vmax.f32 %v1498, 0.0
        %v1628 = vmax.f32 %v1502, 0.0
        %v1629 = vmax.f32 %v1504, 0.0
        %v1630 = vmax.f32 %v1508, 0.0
        %v1631 = vmax.f32 %v1510, 0.0
        %v1632 = vmax.f32 %v1514, 0.0
        %v1633 = vmax.f32 %v1516, 0.0
        %v1634 = vmax.f32 %v1520, 0.0
        %v1635 = vmax.f32 %v1522, 0.0
        %v1636 = vmax.f32 %v1526, 0.0
        %v1637 = vmax.f32 %v1528, 0.0
        %v1638 = vmax.f32 %v1532, 0.0
        %v1639 = vmax.f32 %v1534, 0.0
        %v1640 = vmax.f32 %v1538, 0.0
        %v1641 = vmax.f32 %v1540, 0.0
        %v1642 = vmax.f32 %v1544, 0.0
        %v1643 = vmax.f32 %v1546, 0.0
        %v1644 = vmax.f32 %v1550, 0.0
        %v1645 = vmax.f32 %v1552, 0.0
        %v1646 = vmax.f32 %v1556, 0.0
        %v1647 = vmax.f32 %v1558, 0.0
        %v1648 = vmax.f32 %v1562, 0.0
        %v1649 = vmax.f32 %v1564, 0.0
        %v1650 = vmax.f32 %v1568, 0.0
        %v1651 = vmax.f32 %v1570, 0.0
        %v1652 = vmax.f32 %v1574, 0.0
        %v1653 = vmax.f32 %v1576, 0.0
        %v1654 = vmax.f32 %v1580, 0.0
        %v1655 = vmax.f32 %v1582, 0.0
        %v1656 = vmax.f32 %v1586, 0.0
        %v1657 = vmax.f32 %v1588, 0.0
        %v1658 = vmax.f32 %v1592, 0.0
        %v1659 = vmax.f32 %v1594, 0.0
        %v1660 = vld [vmem:[%s5] sm:$0xff]
        %v1661 = vld [vmem:[%s5 + $0x8] sm:$0xff]
        %v1662 = vld [vmem:[%s5 + $0x10] sm:$0xff]
        %v1663 = vld [vmem:[%s5 + $0x18] sm:$0xff]
        %v1664 = vld [vmem:[%s5 + $0x20] sm:$0xff]
        %v1665 = vld [vmem:[%s5 + $0x28] sm:$0xff]
        %v1666 = vld [vmem:[%s5 + $0x30] sm:$0xff]
        %v1667 = vld [vmem:[%s5 + $0x38] sm:$0xff]
        %v1668 = vld [vmem:[%s5 + $0x40] sm:$0xff]
        %v1669 = vld [vmem:[%s5 + $0x48] sm:$0xff]
        %v1670 = vld [vmem:[%s5 + $0x50] sm:$0xff]
        %v1671 = vld [vmem:[%s5 + $0x58] sm:$0xff]
        %v1672 = vld [vmem:[%s5 + $0x60] sm:$0xff]
        %v1673 = vld [vmem:[%s5 + $0x68] sm:$0xff]
        %v1674 = vld [vmem:[%s5 + $0x70] sm:$0xff]
        %v1675 = vld [vmem:[%s5 + $0x78] sm:$0xff]
        %v1676 = vld [vmem:[%s5 + $0x80] sm:$0xff]
        %v1677 = vld [vmem:[%s5 + $0x88] sm:$0xff]
        %v1678 = vld [vmem:[%s5 + $0x90] sm:$0xff]
        %v1679 = vld [vmem:[%s5 + $0x98] sm:$0xff]
        %v1680 = vld [vmem:[%s5 + $0xa0] sm:$0xff]
        %v1681 = vld [vmem:[%s5 + $0xa8] sm:$0xff]
        %v1682 = vld [vmem:[%s5 + $0xb0] sm:$0xff]
        %v1683 = vld [vmem:[%s5 + $0xb8] sm:$0xff]
        %v1684 = vld [vmem:[%s5 + $0xc0] sm:$0xff]
        %v1685 = vld [vmem:[%s5 + $0xc8] sm:$0xff]
        %v1686 = vld [vmem:[%s5 + $0xd0] sm:$0xff]
        %v1687 = vld [vmem:[%s5 + $0xd8] sm:$0xff]
        %v1688 = vld [vmem:[%s5 + $0xe0] sm:$0xff]
        %v1689 = vld [vmem:[%s5 + $0xe8] sm:$0xff]
        %v1690 = vld [vmem:[%s5 + $0xf0] sm:$0xff]
        %v1691 = vld [vmem:[%s5 + $0xf8] sm:$0xff]
        %v1692 = vld [vmem:[%s6] sm:$0xff]
        %v1693 = vld [vmem:[%s6 + $0x8] sm:$0xff]
        %v1694 = vld [vmem:[%s6 + $0x10] sm:$0xff]
        %v1695 = vld [vmem:[%s6 + $0x18] sm:$0xff]
        %v1696 = vld [vmem:[%s6 + $0x20] sm:$0xff]
        %v1697 = vld [vmem:[%s6 + $0x28] sm:$0xff]
        %v1698 = vld [vmem:[%s6 + $0x30] sm:$0xff]
        %v1699 = vld [vmem:[%s6 + $0x38] sm:$0xff]
        %v1700 = vld [vmem:[%s6 + $0x40] sm:$0xff]
        %v1701 = vld [vmem:[%s6 + $0x48] sm:$0xff]
        %v1702 = vld [vmem:[%s6 + $0x50] sm:$0xff]
        %v1703 = vld [vmem:[%s6 + $0x58] sm:$0xff]
        %v1704 = vld [vmem:[%s6 + $0x60] sm:$0xff]
        %v1705 = vld [vmem:[%s6 + $0x68] sm:$0xff]
        %v1706 = vld [vmem:[%s6 + $0x70] sm:$0xff]
        %v1707 = vld [vmem:[%s6 + $0x78] sm:$0xff]
        %1709 = vset.pattern.permute.xlu0 0
        %1710 = vperm.xlu0 %1709, %v1692
        %v1711 = vpop.permute.xlu0 %1710
        %1714 = vset.pattern.permute.xlu0 0
        %1715 = vperm.xlu0 %1714, %v1693
        %v1716 = vpop.permute.xlu0 %1715
        %1719 = vset.pattern.permute.xlu0 0
        %1720 = vperm.xlu0 %1719, %v1694
        %v1721 = vpop.permute.xlu0 %1720
        %1724 = vset.pattern.permute.xlu0 0
        %1725 = vperm.xlu0 %1724, %v1695
        %v1726 = vpop.permute.xlu0 %1725
        %1729 = vset.pattern.permute.xlu0 0
        %1730 = vperm.xlu0 %1729, %v1696
        %v1731 = vpop.permute.xlu0 %1730
        %1734 = vset.pattern.permute.xlu0 0
        %1735 = vperm.xlu0 %1734, %v1697
        %v1736 = vpop.permute.xlu0 %1735
        %1739 = vset.pattern.permute.xlu0 0
        %1740 = vperm.xlu0 %1739, %v1698
        %v1741 = vpop.permute.xlu0 %1740
        %1744 = vset.pattern.permute.xlu0 0
        %1745 = vperm.xlu0 %1744, %v1699
        %v1746 = vpop.permute.xlu0 %1745
        %1749 = vset.pattern.permute.xlu0 0
        %1750 = vperm.xlu0 %1749, %v1700
        %v1751 = vpop.permute.xlu0 %1750
        %1754 = vset.pattern.permute.xlu0 0
        %1755 = vperm.xlu0 %1754, %v1701
        %v1756 = vpop.permute.xlu0 %1755
        %1759 = vset.pattern.permute.xlu0 0
        %1760 = vperm.xlu0 %1759, %v1702
        %v1761 = vpop.permute.xlu0 %1760
        %1764 = vset.pattern.permute.xlu0 0
        %1765 = vperm.xlu0 %1764, %v1703
        %v1766 = vpop.permute.xlu0 %1765
        %1769 = vset.pattern.permute.xlu0 0
        %1770 = vperm.xlu0 %1769, %v1704
        %v1771 = vpop.permute.xlu0 %1770
        %1774 = vset.pattern.permute.xlu0 0
        %1775 = vperm.xlu0 %1774, %v1705
        %v1776 = vpop.permute.xlu0 %1775
        %1779 = vset.pattern.permute.xlu0 0
        %1780 = vperm.xlu0 %1779, %v1706
        %v1781 = vpop.permute.xlu0 %1780
        %1784 = vset.pattern.permute.xlu0 0
        %1785 = vperm.xlu0 %1784, %v1707
        %v1786 = vpop.permute.xlu0 %1785
        %1788 = vmatprep.subr.mxu0 %v1597
        %1789 = vmatpush1.msra.mxu0 %v1596
        %1790 = vmatprep.subr.mxu0 %v1599
        %1791 = vmatpush1.msra.mxu0 %v1598
        %1792 = vmatprep.subr.mxu0 %v1601
        %1793 = vmatpush1.msra.mxu0 %v1600
        %1794 = vmatprep.subr.mxu0 %v1603
        %1795 = vmatpush1.msra.mxu0 %v1602
        %1796 = vmatprep.subr.mxu0 %v1605
        %1797 = vmatpush1.msra.mxu0 %v1604
        %1798 = vmatprep.subr.mxu0 %v1607
        %1799 = vmatpush1.msra.mxu0 %v1606
        %1800 = vmatprep.subr.mxu0 %v1609
        %1801 = vmatpush1.msra.mxu0 %v1608
        %1802 = vmatprep.subr.mxu0 %v1611
        %1803 = vmatpush1.msra.mxu0 %v1610
        %1804 = vmatprep.subr.mxu0 %v1613
        %1805 = vmatpush1.msra.mxu0 %v1612
        %1806 = vmatprep.subr.mxu0 %v1615
        %1807 = vmatpush1.msra.mxu0 %v1614
        %1808 = vmatprep.subr.mxu0 %v1617
        %1809 = vmatpush1.msra.mxu0 %v1616
        %1810 = vmatprep.subr.mxu0 %v1619
        %1811 = vmatpush1.msra.mxu0 %v1618
        %1812 = vmatprep.subr.mxu0 %v1621
        %1813 = vmatpush1.msra.mxu0 %v1620
        %1814 = vmatprep.subr.mxu0 %v1623
        %1815 = vmatpush1.msra.mxu0 %v1622
        %1816 = vmatprep.subr.mxu0 %v1625
        %1817 = vmatpush1.msra.mxu0 %v1624
        %1818 = vmatprep.subr.mxu0 %v1627
        %1819 = vmatpush1.msra.mxu0 %v1626
        %1820 = vmatprep.subr.mxu0 %v1629
        %1821 = vmatpush1.msra.mxu0 %v1628
        %1822 = vmatprep.subr.mxu0 %v1631
        %1823 = vmatpush1.msra.mxu0 %v1630
        %1824 = vmatprep.subr.mxu0 %v1633
        %1825 = vmatpush1.msra.mxu0 %v1632
        %1826 = vmatprep.subr.mxu0 %v1635
        %1827 = vmatpush1.msra.mxu0 %v1634
        %1828 = vmatprep.subr.mxu0 %v1637
        %1829 = vmatpush1.msra.mxu0 %v1636
        %1830 = vmatprep.subr.mxu0 %v1639
        %1831 = vmatpush1.msra.mxu0 %v1638
        %1832 = vmatprep.subr.mxu0 %v1641
        %1833 = vmatpush1.msra.mxu0 %v1640
        %1834 = vmatprep.subr.mxu0 %v1643
        %1835 = vmatpush1.msra.mxu0 %v1642
        %1836 = vmatprep.subr.mxu0 %v1645
        %1837 = vmatpush1.msra.mxu0 %v1644
        %1838 = vmatprep.subr.mxu0 %v1647
        %1839 = vmatpush1.msra.mxu0 %v1646
        %1840 = vmatprep.subr.mxu0 %v1649
        %1841 = vmatpush1.msra.mxu0 %v1648
        %1842 = vmatprep.subr.mxu0 %v1651
        %1843 = vmatpush1.msra.mxu0 %v1650
        %1844 = vmatprep.subr.mxu0 %v1653
        %1845 = vmatpush1.msra.mxu0 %v1652
        %1846 = vmatprep.subr.mxu0 %v1655
        %1847 = vmatpush1.msra.mxu0 %v1654
        %1848 = vmatprep.subr.mxu0 %v1657
        %1849 = vmatpush1.msra.mxu0 %v1656
        %1850 = vmatprep.subr.mxu0 %v1659
        %1851 = vmatpush1.msra.mxu0 %v1658
        %1852 = vmatprep.mubr.f32.mxu0 %v1661
        %1853 = vmatmul.mubr.f32.gmra.mrb[0].mxu0 %v1660
        %v1854 = vpop.f32.mrb[0].mxu0
        %v1855 = vadd.f32 %v1711, %v1854
        %v1856 = vpop.f32.mrb[0].mxu0
        %v1857 = vadd.f32 %v1711, %v1856
        %1858 = vmatprep.mubr.f32.mxu0 %v1663
        %1859 = vmatmul.mubr.f32.gmra.mrb[0].mxu0 %v1662
        %v1860 = vpop.f32.mrb[0].mxu0
        %v1861 = vadd.f32 %v1716, %v1860
        %v1862 = vpop.f32.mrb[0].mxu0
        %v1863 = vadd.f32 %v1716, %v1862
        %1864 = vmatprep.mubr.f32.mxu0 %v1665
        %1865 = vmatmul.mubr.f32.gmra.mrb[0].mxu0 %v1664
        %v1866 = vpop.f32.mrb[0].mxu0
        %v1867 = vadd.f32 %v1721, %v1866
        %v1868 = vpop.f32.mrb[0].mxu0
        %v1869 = vadd.f32 %v1721, %v1868
        %1870 = vmatprep.mubr.f32.mxu0 %v1667
        %1871 = vmatmul.mubr.f32.gmra.mrb[0].mxu0 %v1666
        %v1872 = vpop.f32.mrb[0].mxu0
        %v1873 = vadd.f32 %v1726, %v1872
        %v1874 = vpop.f32.mrb[0].mxu0
        %v1875 = vadd.f32 %v1726, %v1874
        %1876 = vmatprep.mubr.f32.mxu0 %v1669
        %1877 = vmatmul.mubr.f32.gmra.mrb[0].mxu0 %v1668
        %v1878 = vpop.f32.mrb[0].mxu0
        %v1879 = vadd.f32 %v1731, %v1878
        %v1880 = vpop.f32.mrb[0].mxu0
        %v1881 = vadd.f32 %v1731, %v1880
        %1882 = vmatprep.mubr.f32.mxu0 %v1671
        %1883 = vmatmul.mubr.f32.gmra.mrb[0].mxu0 %v1670
        %v1884 = vpop.f32.mrb[0].mxu0
        %v1885 = vadd.f32 %v1736, %v1884
        %v1886 = vpop.f32.mrb[0].mxu0
        %v1887 = vadd.f32 %v1736, %v1886
        %1888 = vmatprep.mubr.f32.mxu0 %v1673
        %1889 = vmatmul.mubr.f32.gmra.mrb[0].mxu0 %v1672
        %v1890 = vpop.f32.mrb[0].mxu0
        %v1891 = vadd.f32 %v1741, %v1890
        %v1892 = vpop.f32.mrb[0].mxu0
        %v1893 = vadd.f32 %v1741, %v1892
        %1894 = vmatprep.mubr.f32.mxu0 %v1675
        %1895 = vmatmul.mubr.f32.gmra.mrb[0].mxu0 %v1674
        %v1896 = vpop.f32.mrb[0].mxu0
        %v1897 = vadd.f32 %v1746, %v1896
        %v1898 = vpop.f32.mrb[0].mxu0
        %v1899 = vadd.f32 %v1746, %v1898
        %1900 = vmatprep.mubr.f32.mxu0 %v1677
        %1901 = vmatmul.mubr.f32.gmra.mrb[0].mxu0 %v1676
        %v1902 = vpop.f32.mrb[0].mxu0
        %v1903 = vadd.f32 %v1751, %v1902
        %v1904 = vpop.f32.mrb[0].mxu0
        %v1905 = vadd.f32 %v1751, %v1904
        %1906 = vmatprep.mubr.f32.mxu0 %v1679
        %1907 = vmatmul.mubr.f32.gmra.mrb[0].mxu0 %v1678
        %v1908 = vpop.f32.mrb[0].mxu0
        %v1909 = vadd.f32 %v1756, %v1908
        %v1910 = vpop.f32.mrb[0].mxu0
        %v1911 = vadd.f32 %v1756, %v1910
        %1912 = vmatprep.mubr.f32.mxu0 %v1681
        %1913 = vmatmul.mubr.f32.gmra.mrb[0].mxu0 %v1680
        %v1914 = vpop.f32.mrb[0].mxu0
        %v1915 = vadd.f32 %v1761, %v1914
        %v1916 = vpop.f32.mrb[0].mxu0
        %v1917 = vadd.f32 %v1761, %v1916
        %1918 = vmatprep.mubr.f32.mxu0 %v1683
        %1919 = vmatmul.mubr.f32.gmra.mrb[0].mxu0 %v1682
        %v1920 = vpop.f32.mrb[0].mxu0
        %v1921 = vadd.f32 %v1766, %v1920
        %v1922 = vpop.f32.mrb[0].mxu0
        %v1923 = vadd.f32 %v1766, %v1922
        %1924 = vmatprep.mubr.f32.mxu0 %v1685
        %1925 = vmatmul.mubr.f32.gmra.mrb[0].mxu0 %v1684
        %v1926 = vpop.f32.mrb[0].mxu0
        %v1927 = vadd.f32 %v1771, %v1926
        %v1928 = vpop.f32.mrb[0].mxu0
        %v1929 = vadd.f32 %v1771, %v1928
        %1930 = vmatprep.mubr.f32.mxu0 %v1687
        %1931 = vmatmul.mubr.f32.gmra.mrb[0].mxu0 %v1686
        %v1932 = vpop.f32.mrb[0].mxu0
        %v1933 = vadd.f32 %v1776, %v1932
        %v1934 = vpop.f32.mrb[0].mxu0
        %v1935 = vadd.f32 %v1776, %v1934
        %1936 = vmatprep.mubr.f32.mxu0 %v1689
        %1937 = vmatmul.mubr.f32.gmra.mrb[0].mxu0 %v1688
        %v1938 = vpop.f32.mrb[0].mxu0
        %v1939 = vadd.f32 %v1781, %v1938
        %v1940 = vpop.f32.mrb[0].mxu0
        %v1941 = vadd.f32 %v1781, %v1940
        %1942 = vmatprep.mubr.f32.mxu0 %v1691
        %1943 = vmatmul.mubr.f32.gmra.mrb[0].mxu0 %v1690
        %v1944 = vpop.f32.mrb[0].mxu0
        %v1945 = vadd.f32 %v1786, %v1944
        %v1946 = vpop.f32.mrb[0].mxu0
        %v1947 = vadd.f32 %v1786, %v1946
        %1948 = vdwg.mxu0
        %v1949 = vmax.f32 %v1855, 0.0
        %v1950 = vmax.f32 %v1857, 0.0
        %v1951 = vmax.f32 %v1861, 0.0
        %v1952 = vmax.f32 %v1863, 0.0
        %v1953 = vmax.f32 %v1867, 0.0
        %v1954 = vmax.f32 %v1869, 0.0
        %v1955 = vmax.f32 %v1873, 0.0
        %v1956 = vmax.f32 %v1875, 0.0
        %v1957 = vmax.f32 %v1879, 0.0
        %v1958 = vmax.f32 %v1881, 0.0
        %v1959 = vmax.f32 %v1885, 0.0
        %v1960 = vmax.f32 %v1887, 0.0
        %v1961 = vmax.f32 %v1891, 0.0
        %v1962 = vmax.f32 %v1893, 0.0
        %v1963 = vmax.f32 %v1897, 0.0
        %v1964 = vmax.f32 %v1899, 0.0
        %v1965 = vmax.f32 %v1903, 0.0
        %v1966 = vmax.f32 %v1905, 0.0
        %v1967 = vmax.f32 %v1909, 0.0
        %v1968 = vmax.f32 %v1911, 0.0
        %v1969 = vmax.f32 %v1915, 0.0
        %v1970 = vmax.f32 %v1917, 0.0
        %v1971 = vmax.f32 %v1921, 0.0
        %v1972 = vmax.f32 %v1923, 0.0
        %v1973 = vmax.f32 %v1927, 0.0
        %v1974 = vmax.f32 %v1929, 0.0
        %v1975 = vmax.f32 %v1933, 0.0
        %v1976 = vmax.f32 %v1935, 0.0
        %v1977 = vmax.f32 %v1939, 0.0
        %v1978 = vmax.f32 %v1941, 0.0
        %v1979 = vmax.f32 %v1945, 0.0
        %v1980 = vmax.f32 %v1947, 0.0
        %v1981 = vld [vmem:[%s7] sm:$0xff]
        %v1982 = vld [vmem:[%s7 + $0x8] sm:$0xff]
        %v1983 = vld [vmem:[%s7 + $0x10] sm:$0xff]
        %v1984 = vld [vmem:[%s7 + $0x18] sm:$0xff]
        %v1985 = vld [vmem:[%s7 + $0x20] sm:$0xff]
        %v1986 = vld [vmem:[%s7 + $0x28] sm:$0xff]
        %v1987 = vld [vmem:[%s7 + $0x30] sm:$0xff]
        %v1988 = vld [vmem:[%s7 + $0x38] sm:$0xff]
        %v1989 = vld [vmem:[%s7 + $0x40] sm:$0xff]
        %v1990 = vld [vmem:[%s7 + $0x48] sm:$0xff]
        %v1991 = vld [vmem:[%s7 + $0x50] sm:$0xff]
        %v1992 = vld [vmem:[%s7 + $0x58] sm:$0xff]
        %v1993 = vld [vmem:[%s7 + $0x60] sm:$0xff]
        %v1994 = vld [vmem:[%s7 + $0x68] sm:$0xff]
        %v1995 = vld [vmem:[%s7 + $0x70] sm:$0xff]
        %v1996 = vld [vmem:[%s7 + $0x78] sm:$0xff]
        %v1997 = vld [vmem:[%s8] sm:$0xff]
        %v1998 = vld [vmem:[%s8 + $0x8] sm:$0xff]
        %v1999 = vld [vmem:[%s8 + $0x10] sm:$0xff]
        %v2000 = vld [vmem:[%s8 + $0x18] sm:$0xff]
        %v2001 = vld [vmem:[%s8 + $0x20] sm:$0xff]
        %v2002 = vld [vmem:[%s8 + $0x28] sm:$0xff]
        %v2003 = vld [vmem:[%s8 + $0x30] sm:$0xff]
        %v2004 = vld [vmem:[%s8 + $0x38] sm:$0xff]
        %v2005 = vld [vmem:[%s8 + $0x40] sm:$0xff]
        %v2006 = vld [vmem:[%s8 + $0x48] sm:$0xff]
        %v2007 = vld [vmem:[%s8 + $0x50] sm:$0xff]
        %v2008 = vld [vmem:[%s8 + $0x58] sm:$0xff]
        %v2009 = vld [vmem:[%s8 + $0x60] sm:$0xff]
        %v2010 = vld [vmem:[%s8 + $0x68] sm:$0xff]
        %v2011 = vld [vmem:[%s8 + $0x70] sm:$0xff]
        %v2012 = vld [vmem:[%s8 + $0x78] sm:$0xff]
        %2014 = vset.pattern.permute.xlu0 0
        %2015 = vperm.xlu0 %2014, %v1997
        %v2016 = vpop.permute.xlu0 %2015
        %2019 = vset.pattern.permute.xlu0 0
        %2020 = vperm.xlu0 %2019, %v1998
        %v2021 = vpop.permute.xlu0 %2020
        %2024 = vset.pattern.permute.xlu0 0
        %2025 = vperm.xlu0 %2024, %v1999
        %v2026 = vpop.permute.xlu0 %2025
        %2029 = vset.pattern.permute.xlu0 0
        %2030 = vperm.xlu0 %2029, %v2000
        %v2031 = vpop.permute.xlu0 %2030
        %2034 = vset.pattern.permute.xlu0 0
        %2035 = vperm.xlu0 %2034, %v2001
        %v2036 = vpop.permute.xlu0 %2035
        %2039 = vset.pattern.permute.xlu0 0
        %2040 = vperm.xlu0 %2039, %v2002
        %v2041 = vpop.permute.xlu0 %2040
        %2044 = vset.pattern.permute.xlu0 0
        %2045 = vperm.xlu0 %2044, %v2003
        %v2046 = vpop.permute.xlu0 %2045
        %2049 = vset.pattern.permute.xlu0 0
        %2050 = vperm.xlu0 %2049, %v2004
        %v2051 = vpop.permute.xlu0 %2050
        %2054 = vset.pattern.permute.xlu0 0
        %2055 = vperm.xlu0 %2054, %v2005
        %v2056 = vpop.permute.xlu0 %2055
        %2059 = vset.pattern.permute.xlu0 0
        %2060 = vperm.xlu0 %2059, %v2006
        %v2061 = vpop.permute.xlu0 %2060
        %2064 = vset.pattern.permute.xlu0 0
        %2065 = vperm.xlu0 %2064, %v2007
        %v2066 = vpop.permute.xlu0 %2065
        %2069 = vset.pattern.permute.xlu0 0
        %2070 = vperm.xlu0 %2069, %v2008
        %v2071 = vpop.permute.xlu0 %2070
        %2074 = vset.pattern.permute.xlu0 0
        %2075 = vperm.xlu0 %2074, %v2009
        %v2076 = vpop.permute.xlu0 %2075
        %2079 = vset.pattern.permute.xlu0 0
        %2080 = vperm.xlu0 %2079, %v2010
        %v2081 = vpop.permute.xlu0 %2080
        %2084 = vset.pattern.permute.xlu0 0
        %2085 = vperm.xlu0 %2084, %v2011
        %v2086 = vpop.permute.xlu0 %2085
        %2089 = vset.pattern.permute.xlu0 0
        %2090 = vperm.xlu0 %2089, %v2012
        %v2091 = vpop.permute.xlu0 %2090
        %2093 = vmatprep.subr.mxu0 %v1950
        %2094 = vmatpush1.msra.mxu0 %v1949
        %2095 = vmatprep.subr.mxu0 %v1952
        %2096 = vmatpush1.msra.mxu0 %v1951
        %2097 = vmatprep.subr.mxu0 %v1954
        %2098 = vmatpush1.msra.mxu0 %v1953
        %2099 = vmatprep.subr.mxu0 %v1956
        %2100 = vmatpush1.msra.mxu0 %v1955
        %2101 = vmatprep.subr.mxu0 %v1958
        %2102 = vmatpush1.msra.mxu0 %v1957
        %2103 = vmatprep.subr.mxu0 %v1960
        %2104 = vmatpush1.msra.mxu0 %v1959
        %2105 = vmatprep.subr.mxu0 %v1962
        %2106 = vmatpush1.msra.mxu0 %v1961
        %2107 = vmatprep.subr.mxu0 %v1964
        %2108 = vmatpush1.msra.mxu0 %v1963
        %2109 = vmatprep.subr.mxu0 %v1966
        %2110 = vmatpush1.msra.mxu0 %v1965
        %2111 = vmatprep.subr.mxu0 %v1968
        %2112 = vmatpush1.msra.mxu0 %v1967
        %2113 = vmatprep.subr.mxu0 %v1970
        %2114 = vmatpush1.msra.mxu0 %v1969
        %2115 = vmatprep.subr.mxu0 %v1972
        %2116 = vmatpush1.msra.mxu0 %v1971
        %2117 = vmatprep.subr.mxu0 %v1974
        %2118 = vmatpush1.msra.mxu0 %v1973
        %2119 = vmatprep.subr.mxu0 %v1976
        %2120 = vmatpush1.msra.mxu0 %v1975
        %2121 = vmatprep.subr.mxu0 %v1978
        %2122 = vmatpush1.msra.mxu0 %v1977
        %2123 = vmatprep.subr.mxu0 %v1980
        %2124 = vmatpush1.msra.mxu0 %v1979
        %2125 = vmatprep.subr.mxu0 0.0
        %2126 = vmatpush1.msra.mxu0 0.0
        %2127 = vmatprep.subr.mxu0 0.0
        %2128 = vmatpush1.msra.mxu0 0.0
        %2129 = vmatprep.subr.mxu0 0.0
        %2130 = vmatpush1.msra.mxu0 0.0
        %2131 = vmatprep.subr.mxu0 0.0
        %2132 = vmatpush1.msra.mxu0 0.0
        %2133 = vmatprep.subr.mxu0 0.0
        %2134 = vmatpush1.msra.mxu0 0.0
        %2135 = vmatprep.subr.mxu0 0.0
        %2136 = vmatpush1.msra.mxu0 0.0
        %2137 = vmatprep.subr.mxu0 0.0
        %2138 = vmatpush1.msra.mxu0 0.0
        %2139 = vmatprep.subr.mxu0 0.0
        %2140 = vmatpush1.msra.mxu0 0.0
        %2141 = vmatprep.subr.mxu0 0.0
        %2142 = vmatpush1.msra.mxu0 0.0
        %2143 = vmatprep.subr.mxu0 0.0
        %2144 = vmatpush1.msra.mxu0 0.0
        %2145 = vmatprep.subr.mxu0 0.0
        %2146 = vmatpush1.msra.mxu0 0.0
        %2147 = vmatprep.subr.mxu0 0.0
        %2148 = vmatpush1.msra.mxu0 0.0
        %2149 = vmatprep.subr.mxu0 0.0
        %2150 = vmatpush1.msra.mxu0 0.0
        %2151 = vmatprep.subr.mxu0 0.0
        %2152 = vmatpush1.msra.mxu0 0.0
        %2153 = vmatprep.subr.mxu0 0.0
        %2154 = vmatpush1.msra.mxu0 0.0
        %2155 = vmatprep.subr.mxu0 0.0
        %2156 = vmatpush1.msra.mxu0 0.0
        %2157 = vmatprep.mubr.f32.mxu0 0.0
        %2158 = vmatmul.mubr.f32.gmra.mrb[0].mxu0 %v1981
        %v2159 = vpop.f32.mrb[0].mxu0
        %v2160 = vadd.f32 %v2016, %v2159
        %v2161 = vpop.f32.mrb[0].mxu0
        %v2162 = vadd.f32 %v2016, %v2161
        %2163 = vmatprep.mubr.f32.mxu0 0.0
        %2164 = vmatmul.mubr.f32.gmra.mrb[0].mxu0 %v1982
        %v2165 = vpop.f32.mrb[0].mxu0
        %v2166 = vadd.f32 %v2021, %v2165
        %v2167 = vpop.f32.mrb[0].mxu0
        %v2168 = vadd.f32 %v2021, %v2167
        %2169 = vmatprep.mubr.f32.mxu0 0.0
        %2170 = vmatmul.mubr.f32.gmra.mrb[0].mxu0 %v1983
        %v2171 = vpop.f32.mrb[0].mxu0
        %v2172 = vadd.f32 %v2026, %v2171
        %v2173 = vpop.f32.mrb[0].mxu0
        %v2174 = vadd.f32 %v2026, %v2173
        %2175 = vmatprep.mubr.f32.mxu0 0.0
        %2176 = vmatmul.mubr.f32.gmra.mrb[0].mxu0 %v1984
        %v2177 = vpop.f32.mrb[0].mxu0
        %v2178 = vadd.f32 %v2031, %v2177
        %v2179 = vpop.f32.mrb[0].mxu0
        %v2180 = vadd.f32 %v2031, %v2179
        %2181 = vmatprep.mubr.f32.mxu0 0.0
        %2182 = vmatmul.mubr.f32.gmra.mrb[0].mxu0 %v1985
        %v2183 = vpop.f32.mrb[0].mxu0
        %v2184 = vadd.f32 %v2036, %v2183
        %v2185 = vpop.f32.mrb[0].mxu0
        %v2186 = vadd.f32 %v2036, %v2185
        %2187 = vmatprep.mubr.f32.mxu0 0.0
        %2188 = vmatmul.mubr.f32.gmra.mrb[0].mxu0 %v1986
        %v2189 = vpop.f32.mrb[0].mxu0
        %v2190 = vadd.f32 %v2041, %v2189
        %v2191 = vpop.f32.mrb[0].mxu0
        %v2192 = vadd.f32 %v2041, %v2191
        %2193 = vmatprep.mubr.f32.mxu0 0.0
        %2194 = vmatmul.mubr.f32.gmra.mrb[0].mxu0 %v1987
        %v2195 = vpop.f32.mrb[0].mxu0
        %v2196 = vadd.f32 %v2046, %v2195
        %v2197 = vpop.f32.mrb[0].mxu0
        %v2198 = vadd.f32 %v2046, %v2197
        %2199 = vmatprep.mubr.f32.mxu0 0.0
        %2200 = vmatmul.mubr.f32.gmra.mrb[0].mxu0 %v1988
        %v2201 = vpop.f32.mrb[0].mxu0
        %v2202 = vadd.f32 %v2051, %v2201
        %v2203 = vpop.f32.mrb[0].mxu0
        %v2204 = vadd.f32 %v2051, %v2203
        %2205 = vmatprep.mubr.f32.mxu0 0.0
        %2206 = vmatmul.mubr.f32.gmra.mrb[0].mxu0 %v1989
        %v2207 = vpop.f32.mrb[0].mxu0
        %v2208 = vadd.f32 %v2056, %v2207
        %v2209 = vpop.f32.mrb[0].mxu0
        %v2210 = vadd.f32 %v2056, %v2209
        %2211 = vmatprep.mubr.f32.mxu0 0.0
        %2212 = vmatmul.mubr.f32.gmra.mrb[0].mxu0 %v1990
        %v2213 = vpop.f32.mrb[0].mxu0
        %v2214 = vadd.f32 %v2061, %v2213
        %v2215 = vpop.f32.mrb[0].mxu0
        %v2216 = vadd.f32 %v2061, %v2215
        %2217 = vmatprep.mubr.f32.mxu0 0.0
        %2218 = vmatmul.mubr.f32.gmra.mrb[0].mxu0 %v1991
        %v2219 = vpop.f32.mrb[0].mxu0
        %v2220 = vadd.f32 %v2066, %v2219
        %v2221 = vpop.f32.mrb[0].mxu0
        %v2222 = vadd.f32 %v2066, %v2221
        %2223 = vmatprep.mubr.f32.mxu0 0.0
        %2224 = vmatmul.mubr.f32.gmra.mrb[0].mxu0 %v1992
        %v2225 = vpop.f32.mrb[0].mxu0
        %v2226 = vadd.f32 %v2071, %v2225
        %v2227 = vpop.f32.mrb[0].mxu0
        %v2228 = vadd.f32 %v2071, %v2227
        %2229 = vmatprep.mubr.f32.mxu0 0.0
        %2230 = vmatmul.mubr.f32.gmra.mrb[0].mxu0 %v1993
        %v2231 = vpop.f32.mrb[0].mxu0
        %v2232 = vadd.f32 %v2076, %v2231
        %v2233 = vpop.f32.mrb[0].mxu0
        %v2234 = vadd.f32 %v2076, %v2233
        %2235 = vmatprep.mubr.f32.mxu0 0.0
        %2236 = vmatmul.mubr.f32.gmra.mrb[0].mxu0 %v1994
        %v2237 = vpop.f32.mrb[0].mxu0
        %v2238 = vadd.f32 %v2081, %v2237
        %v2239 = vpop.f32.mrb[0].mxu0
        %v2240 = vadd.f32 %v2081, %v2239
        %2241 = vmatprep.mubr.f32.mxu0 0.0
        %2242 = vmatmul.mubr.f32.gmra.mrb[0].mxu0 %v1995
        %v2243 = vpop.f32.mrb[0].mxu0
        %v2244 = vadd.f32 %v2086, %v2243
        %v2245 = vpop.f32.mrb[0].mxu0
        %v2246 = vadd.f32 %v2086, %v2245
        %2247 = vmatprep.mubr.f32.mxu0 0.0
        %2248 = vmatmul.mubr.f32.gmra.mrb[0].mxu0 %v1996
        %v2249 = vpop.f32.mrb[0].mxu0
        %v2250 = vadd.f32 %v2091, %v2249
        %v2251 = vpop.f32.mrb[0].mxu0
        %v2252 = vadd.f32 %v2091, %v2251
        %2253 = vdwg.mxu0
        %v2254 = vmax.f32 %v2160, 0.0
        %v2255 = vmax.f32 %v2162, 0.0
        %v2256 = vmax.f32 %v2166, 0.0
        %v2257 = vmax.f32 %v2168, 0.0
        %v2258 = vmax.f32 %v2172, 0.0
        %v2259 = vmax.f32 %v2174, 0.0
        %v2260 = vmax.f32 %v2178, 0.0
        %v2261 = vmax.f32 %v2180, 0.0
        %v2262 = vmax.f32 %v2184, 0.0
        %v2263 = vmax.f32 %v2186, 0.0
        %v2264 = vmax.f32 %v2190, 0.0
        %v2265 = vmax.f32 %v2192, 0.0
        %v2266 = vmax.f32 %v2196, 0.0
        %v2267 = vmax.f32 %v2198, 0.0
        %v2268 = vmax.f32 %v2202, 0.0
        %v2269 = vmax.f32 %v2204, 0.0
        %v2270 = vmax.f32 %v2208, 0.0
        %v2271 = vmax.f32 %v2210, 0.0
        %v2272 = vmax.f32 %v2214, 0.0
        %v2273 = vmax.f32 %v2216, 0.0
        %v2274 = vmax.f32 %v2220, 0.0
        %v2275 = vmax.f32 %v2222, 0.0
        %v2276 = vmax.f32 %v2226, 0.0
        %v2277 = vmax.f32 %v2228, 0.0
        %v2278 = vmax.f32 %v2232, 0.0
        %v2279 = vmax.f32 %v2234, 0.0
        %v2280 = vmax.f32 %v2238, 0.0
        %v2281 = vmax.f32 %v2240, 0.0
        %v2282 = vmax.f32 %v2244, 0.0
        %v2283 = vmax.f32 %v2246, 0.0
        %v2284 = vmax.f32 %v2250, 0.0
        %v2285 = vmax.f32 %v2252, 0.0
        %v2286 = vld [vmem:[%s9] sm:$0xff]
        %v2287 = vld [vmem:[%s9 + $0x8] sm:$0xff]
        %v2288 = vld [vmem:[%s9 + $0x10] sm:$0xff]
        %v2289 = vld [vmem:[%s9 + $0x18] sm:$0xff]
        %v2290 = vld [vmem:[%s9 + $0x20] sm:$0xff]
        %v2291 = vld [vmem:[%s9 + $0x28] sm:$0xff]
        %v2292 = vld [vmem:[%s9 + $0x30] sm:$0xff]
        %v2293 = vld [vmem:[%s9 + $0x38] sm:$0xff]
        %v2294 = vld [vmem:[%s10] sm:$0xff]
        %v2295 = vld [vmem:[%s10 + $0x8] sm:$0xff]
        %v2296 = vld [vmem:[%s10 + $0x10] sm:$0xff]
        %v2297 = vld [vmem:[%s10 + $0x18] sm:$0xff]
        %v2298 = vld [vmem:[%s10 + $0x20] sm:$0xff]
        %v2299 = vld [vmem:[%s10 + $0x28] sm:$0xff]
        %v2300 = vld [vmem:[%s10 + $0x30] sm:$0xff]
        %v2301 = vld [vmem:[%s10 + $0x38] sm:$0xff]
        %2303 = vset.pattern.permute.xlu0 0
        %2304 = vperm.xlu0 %2303, %v2294
        %v2305 = vpop.permute.xlu0 %2304
        %2308 = vset.pattern.permute.xlu0 0
        %2309 = vperm.xlu0 %2308, %v2295
        %v2310 = vpop.permute.xlu0 %2309
        %2313 = vset.pattern.permute.xlu0 0
        %2314 = vperm.xlu0 %2313, %v2296
        %v2315 = vpop.permute.xlu0 %2314
        %2318 = vset.pattern.permute.xlu0 0
        %2319 = vperm.xlu0 %2318, %v2297
        %v2320 = vpop.permute.xlu0 %2319
        %2323 = vset.pattern.permute.xlu0 0
        %2324 = vperm.xlu0 %2323, %v2298
        %v2325 = vpop.permute.xlu0 %2324
        %2328 = vset.pattern.permute.xlu0 0
        %2329 = vperm.xlu0 %2328, %v2299
        %v2330 = vpop.permute.xlu0 %2329
        %2333 = vset.pattern.permute.xlu0 0
        %2334 = vperm.xlu0 %2333, %v2300
        %v2335 = vpop.permute.xlu0 %2334
        %2338 = vset.pattern.permute.xlu0 0
        %2339 = vperm.xlu0 %2338, %v2301
        %v2340 = vpop.permute.xlu0 %2339
        %2342 = vmatprep.subr.mxu0 %v2255
        %2343 = vmatpush1.msra.mxu0 %v2254
        %2344 = vmatprep.subr.mxu0 %v2257
        %2345 = vmatpush1.msra.mxu0 %v2256
        %2346 = vmatprep.subr.mxu0 %v2259
        %2347 = vmatpush1.msra.mxu0 %v2258
        %2348 = vmatprep.subr.mxu0 %v2261
        %2349 = vmatpush1.msra.mxu0 %v2260
        %2350 = vmatprep.subr.mxu0 %v2263
        %2351 = vmatpush1.msra.mxu0 %v2262
        %2352 = vmatprep.subr.mxu0 %v2265
        %2353 = vmatpush1.msra.mxu0 %v2264
        %2354 = vmatprep.subr.mxu0 %v2267
        %2355 = vmatpush1.msra.mxu0 %v2266
        %2356 = vmatprep.subr.mxu0 %v2269
        %2357 = vmatpush1.msra.mxu0 %v2268
        %2358 = vmatprep.subr.mxu0 %v2271
        %2359 = vmatpush1.msra.mxu0 %v2270
        %2360 = vmatprep.subr.mxu0 %v2273
        %2361 = vmatpush1.msra.mxu0 %v2272
        %2362 = vmatprep.subr.mxu0 %v2275
        %2363 = vmatpush1.msra.mxu0 %v2274
        %2364 = vmatprep.subr.mxu0 %v2277
        %2365 = vmatpush1.msra.mxu0 %v2276
        %2366 = vmatprep.subr.mxu0 %v2279
        %2367 = vmatpush1.msra.mxu0 %v2278
        %2368 = vmatprep.subr.mxu0 %v2281
        %2369 = vmatpush1.msra.mxu0 %v2280
        %2370 = vmatprep.subr.mxu0 %v2283
        %2371 = vmatpush1.msra.mxu0 %v2282
        %2372 = vmatprep.subr.mxu0 %v2285
        %2373 = vmatpush1.msra.mxu0 %v2284
        %2374 = vmatprep.subr.mxu0 0.0
        %2375 = vmatpush1.msra.mxu0 0.0
        %2376 = vmatprep.subr.mxu0 0.0
        %2377 = vmatpush1.msra.mxu0 0.0
        %2378 = vmatprep.subr.mxu0 0.0
        %2379 = vmatpush1.msra.mxu0 0.0
        %2380 = vmatprep.subr.mxu0 0.0
        %2381 = vmatpush1.msra.mxu0 0.0
        %2382 = vmatprep.subr.mxu0 0.0
        %2383 = vmatpush1.msra.mxu0 0.0
        %2384 = vmatprep.subr.mxu0 0.0
        %2385 = vmatpush1.msra.mxu0 0.0
        %2386 = vmatprep.subr.mxu0 0.0
        %2387 = vmatpush1.msra.mxu0 0.0
        %2388 = vmatprep.subr.mxu0 0.0
        %2389 = vmatpush1.msra.mxu0 0.0
        %2390 = vmatprep.subr.mxu0 0.0
        %2391 = vmatpush1.msra.mxu0 0.0
        %2392 = vmatprep.subr.mxu0 0.0
        %2393 = vmatpush1.msra.mxu0 0.0
        %2394 = vmatprep.subr.mxu0 0.0
        %2395 = vmatpush1.msra.mxu0 0.0
        %2396 = vmatprep.subr.mxu0 0.0
        %2397 = vmatpush1.msra.mxu0 0.0
        %2398 = vmatprep.subr.mxu0 0.0
        %2399 = vmatpush1.msra.mxu0 0.0
        %2400 = vmatprep.subr.mxu0 0.0
        %2401 = vmatpush1.msra.mxu0 0.0
        %2402 = vmatprep.subr.mxu0 0.0
        %2403 = vmatpush1.msra.mxu0 0.0
        %2404 = vmatprep.subr.mxu0 0.0
        %2405 = vmatpush1.msra.mxu0 0.0
        %2406 = vmatprep.mubr.f32.mxu0 0.0
        %2407 = vmatmul.mubr.f32.gmra.mrb[0].mxu0 %v2286
        %v2408 = vpop.f32.mrb[0].mxu0
        %v2409 = vadd.f32 %v2305, %v2408
        %v2410 = vpop.f32.mrb[0].mxu0
        %v2411 = vadd.f32 %v2305, %v2410
        %2412 = vmatprep.mubr.f32.mxu0 0.0
        %2413 = vmatmul.mubr.f32.gmra.mrb[0].mxu0 %v2287
        %v2414 = vpop.f32.mrb[0].mxu0
        %v2415 = vadd.f32 %v2310, %v2414
        %v2416 = vpop.f32.mrb[0].mxu0
        %v2417 = vadd.f32 %v2310, %v2416
        %2418 = vmatprep.mubr.f32.mxu0 0.0
        %2419 = vmatmul.mubr.f32.gmra.mrb[0].mxu0 %v2288
        %v2420 = vpop.f32.mrb[0].mxu0
        %v2421 = vadd.f32 %v2315, %v2420
        %v2422 = vpop.f32.mrb[0].mxu0
        %v2423 = vadd.f32 %v2315, %v2422
        %2424 = vmatprep.mubr.f32.mxu0 0.0
        %2425 = vmatmul.mubr.f32.gmra.mrb[0].mxu0 %v2289
        %v2426 = vpop.f32.mrb[0].mxu0
        %v2427 = vadd.f32 %v2320, %v2426
        %v2428 = vpop.f32.mrb[0].mxu0
        %v2429 = vadd.f32 %v2320, %v2428
        %2430 = vmatprep.mubr.f32.mxu0 0.0
        %2431 = vmatmul.mubr.f32.gmra.mrb[0].mxu0 %v2290
        %v2432 = vpop.f32.mrb[0].mxu0
        %v2433 = vadd.f32 %v2325, %v2432
        %v2434 = vpop.f32.mrb[0].mxu0
        %v2435 = vadd.f32 %v2325, %v2434
        %2436 = vmatprep.mubr.f32.mxu0 0.0
        %2437 = vmatmul.mubr.f32.gmra.mrb[0].mxu0 %v2291
        %v2438 = vpop.f32.mrb[0].mxu0
        %v2439 = vadd.f32 %v2330, %v2438
        %v2440 = vpop.f32.mrb[0].mxu0
        %v2441 = vadd.f32 %v2330, %v2440
        %2442 = vmatprep.mubr.f32.mxu0 0.0
        %2443 = vmatmul.mubr.f32.gmra.mrb[0].mxu0 %v2292
        %v2444 = vpop.f32.mrb[0].mxu0
        %v2445 = vadd.f32 %v2335, %v2444
        %v2446 = vpop.f32.mrb[0].mxu0
        %v2447 = vadd.f32 %v2335, %v2446
        %2448 = vmatprep.mubr.f32.mxu0 0.0
        %2449 = vmatmul.mubr.f32.gmra.mrb[0].mxu0 %v2293
        %v2450 = vpop.f32.mrb[0].mxu0
        %v2451 = vadd.f32 %v2340, %v2450
        %v2452 = vpop.f32.mrb[0].mxu0
        %v2453 = vadd.f32 %v2340, %v2452
        %2454 = vdwg.mxu0
        %v2455 = vmax.f32 %v2409, 0.0
        %v2456 = vmax.f32 %v2411, 0.0
        %v2457 = vmax.f32 %v2415, 0.0
        %v2458 = vmax.f32 %v2417, 0.0
        %v2459 = vmax.f32 %v2421, 0.0
        %v2460 = vmax.f32 %v2423, 0.0
        %v2461 = vmax.f32 %v2427, 0.0
        %v2462 = vmax.f32 %v2429, 0.0
        %v2463 = vmax.f32 %v2433, 0.0
        %v2464 = vmax.f32 %v2435, 0.0
        %v2465 = vmax.f32 %v2439, 0.0
        %v2466 = vmax.f32 %v2441, 0.0
        %v2467 = vmax.f32 %v2445, 0.0
        %v2468 = vmax.f32 %v2447, 0.0
        %v2469 = vmax.f32 %v2451, 0.0
        %v2470 = vmax.f32 %v2453, 0.0
        %v2471 = vld [vmem:[%s11] sm:$0xff]
        %v2472 = vld [vmem:[%s11 + $0x8] sm:$0xff]
        %v2473 = vld [vmem:[%s11 + $0x10] sm:$0xff]
        %v2474 = vld [vmem:[%s11 + $0x18] sm:$0xff]
        %v2475 = vld [vmem:[%s11 + $0x20] sm:$0xff]
        %v2476 = vld [vmem:[%s11 + $0x28] sm:$0xff]
        %v2477 = vld [vmem:[%s11 + $0x30] sm:$0xff]
        %v2478 = vld [vmem:[%s11 + $0x38] sm:$0xff]
        %v2479 = vld [vmem:[%s12] sm:$0xff]
        %v2480 = vld [vmem:[%s12 + $0x8] sm:$0xff]
        %v2481 = vld [vmem:[%s12 + $0x10] sm:$0xff]
        %v2482 = vld [vmem:[%s12 + $0x18] sm:$0xff]
        %v2483 = vld [vmem:[%s12 + $0x20] sm:$0xff]
        %v2484 = vld [vmem:[%s12 + $0x28] sm:$0xff]
        %v2485 = vld [vmem:[%s12 + $0x30] sm:$0xff]
        %v2486 = vld [vmem:[%s12 + $0x38] sm:$0xff]
        %2488 = vset.pattern.permute.xlu0 0
        %2489 = vperm.xlu0 %2488, %v2479
        %v2490 = vpop.permute.xlu0 %2489
        %2493 = vset.pattern.permute.xlu0 0
        %2494 = vperm.xlu0 %2493, %v2480
        %v2495 = vpop.permute.xlu0 %2494
        %2498 = vset.pattern.permute.xlu0 0
        %2499 = vperm.xlu0 %2498, %v2481
        %v2500 = vpop.permute.xlu0 %2499
        %2503 = vset.pattern.permute.xlu0 0
        %2504 = vperm.xlu0 %2503, %v2482
        %v2505 = vpop.permute.xlu0 %2504
        %2508 = vset.pattern.permute.xlu0 0
        %2509 = vperm.xlu0 %2508, %v2483
        %v2510 = vpop.permute.xlu0 %2509
        %2513 = vset.pattern.permute.xlu0 0
        %2514 = vperm.xlu0 %2513, %v2484
        %v2515 = vpop.permute.xlu0 %2514
        %2518 = vset.pattern.permute.xlu0 0
        %2519 = vperm.xlu0 %2518, %v2485
        %v2520 = vpop.permute.xlu0 %2519
        %2523 = vset.pattern.permute.xlu0 0
        %2524 = vperm.xlu0 %2523, %v2486
        %v2525 = vpop.permute.xlu0 %2524
        %vm2527 = vcmask 523264
        %v2529 = vsel %vm2527, %v2471, 0
        %v2532 = vsel %vm2527, %v2472, 0
        %v2535 = vsel %vm2527, %v2473, 0
        %v2538 = vsel %vm2527, %v2474, 0
        %v2541 = vsel %vm2527, %v2475, 0
        %v2544 = vsel %vm2527, %v2476, 0
        %v2547 = vsel %vm2527, %v2477, 0
        %v2550 = vsel %vm2527, %v2478, 0
        %2552 = vmatprep.subr.mxu0 %v2456
        %2553 = vmatpush1.msra.mxu0 %v2455
        %2554 = vmatprep.subr.mxu0 %v2458
        %2555 = vmatpush1.msra.mxu0 %v2457
        %2556 = vmatprep.subr.mxu0 %v2460
        %2557 = vmatpush1.msra.mxu0 %v2459
        %2558 = vmatprep.subr.mxu0 %v2462
        %2559 = vmatpush1.msra.mxu0 %v2461
        %2560 = vmatprep.subr.mxu0 %v2464
        %2561 = vmatpush1.msra.mxu0 %v2463
        %2562 = vmatprep.subr.mxu0 %v2466
        %2563 = vmatpush1.msra.mxu0 %v2465
        %2564 = vmatprep.subr.mxu0 %v2468
        %2565 = vmatpush1.msra.mxu0 %v2467
        %2566 = vmatprep.subr.mxu0 %v2470
        %2567 = vmatpush1.msra.mxu0 %v2469
        %2568 = vmatprep.subr.mxu0 0.0
        %2569 = vmatpush1.msra.mxu0 0.0
        %2570 = vmatprep.subr.mxu0 0.0
        %2571 = vmatpush1.msra.mxu0 0.0
        %2572 = vmatprep.subr.mxu0 0.0
        %2573 = vmatpush1.msra.mxu0 0.0
        %2574 = vmatprep.subr.mxu0 0.0
        %2575 = vmatpush1.msra.mxu0 0.0
        %2576 = vmatprep.subr.mxu0 0.0
        %2577 = vmatpush1.msra.mxu0 0.0
        %2578 = vmatprep.subr.mxu0 0.0
        %2579 = vmatpush1.msra.mxu0 0.0
        %2580 = vmatprep.subr.mxu0 0.0
        %2581 = vmatpush1.msra.mxu0 0.0
        %2582 = vmatprep.subr.mxu0 0.0
        %2583 = vmatpush1.msra.mxu0 0.0
        %2584 = vmatprep.subr.mxu0 0.0
        %2585 = vmatpush1.msra.mxu0 0.0
        %2586 = vmatprep.subr.mxu0 0.0
        %2587 = vmatpush1.msra.mxu0 0.0
        %2588 = vmatprep.subr.mxu0 0.0
        %2589 = vmatpush1.msra.mxu0 0.0
        %2590 = vmatprep.subr.mxu0 0.0
        %2591 = vmatpush1.msra.mxu0 0.0
        %2592 = vmatprep.subr.mxu0 0.0
        %2593 = vmatpush1.msra.mxu0 0.0
        %2594 = vmatprep.subr.mxu0 0.0
        %2595 = vmatpush1.msra.mxu0 0.0
        %2596 = vmatprep.subr.mxu0 0.0
        %2597 = vmatpush1.msra.mxu0 0.0
        %2598 = vmatprep.subr.mxu0 0.0
        %2599 = vmatpush1.msra.mxu0 0.0
        %2600 = vmatprep.subr.mxu0 0.0
        %2601 = vmatpush1.msra.mxu0 0.0
        %2602 = vmatprep.subr.mxu0 0.0
        %2603 = vmatpush1.msra.mxu0 0.0
        %2604 = vmatprep.subr.mxu0 0.0
        %2605 = vmatpush1.msra.mxu0 0.0
        %2606 = vmatprep.subr.mxu0 0.0
        %2607 = vmatpush1.msra.mxu0 0.0
        %2608 = vmatprep.subr.mxu0 0.0
        %2609 = vmatpush1.msra.mxu0 0.0
        %2610 = vmatprep.subr.mxu0 0.0
        %2611 = vmatpush1.msra.mxu0 0.0
        %2612 = vmatprep.subr.mxu0 0.0
        %2613 = vmatpush1.msra.mxu0 0.0
        %2614 = vmatprep.subr.mxu0 0.0
        %2615 = vmatpush1.msra.mxu0 0.0
        %2616 = vmatprep.mubr.f32.mxu0 0.0
        %2617 = vmatmul.mubr.f32.gmra.mrb[0].mxu0 %v2529
        %v2618 = vpop.f32.mrb[0].mxu0
        %v2619 = vadd.f32 %v2490, %v2618
        %v2620 = vpop.f32.mrb[0].mxu0
        %v2621 = vadd.f32 %v2490, %v2620
        %2622 = vmatprep.mubr.f32.mxu0 0.0
        %2623 = vmatmul.mubr.f32.gmra.mrb[0].mxu0 %v2532
        %v2624 = vpop.f32.mrb[0].mxu0
        %v2625 = vadd.f32 %v2495, %v2624
        %v2626 = vpop.f32.mrb[0].mxu0
        %v2627 = vadd.f32 %v2495, %v2626
        %2628 = vmatprep.mubr.f32.mxu0 0.0
        %2629 = vmatmul.mubr.f32.gmra.mrb[0].mxu0 %v2535
        %v2630 = vpop.f32.mrb[0].mxu0
        %v2631 = vadd.f32 %v2500, %v2630
        %v2632 = vpop.f32.mrb[0].mxu0
        %v2633 = vadd.f32 %v2500, %v2632
        %2634 = vmatprep.mubr.f32.mxu0 0.0
        %2635 = vmatmul.mubr.f32.gmra.mrb[0].mxu0 %v2538
        %v2636 = vpop.f32.mrb[0].mxu0
        %v2637 = vadd.f32 %v2505, %v2636
        %v2638 = vpop.f32.mrb[0].mxu0
        %v2639 = vadd.f32 %v2505, %v2638
        %2640 = vmatprep.mubr.f32.mxu0 0.0
        %2641 = vmatmul.mubr.f32.gmra.mrb[0].mxu0 %v2541
        %v2642 = vpop.f32.mrb[0].mxu0
        %v2643 = vadd.f32 %v2510, %v2642
        %v2644 = vpop.f32.mrb[0].mxu0
        %v2645 = vadd.f32 %v2510, %v2644
        %2646 = vmatprep.mubr.f32.mxu0 0.0
        %2647 = vmatmul.mubr.f32.gmra.mrb[0].mxu0 %v2544
        %v2648 = vpop.f32.mrb[0].mxu0
        %v2649 = vadd.f32 %v2515, %v2648
        %v2650 = vpop.f32.mrb[0].mxu0
        %v2651 = vadd.f32 %v2515, %v2650
        %2652 = vmatprep.mubr.f32.mxu0 0.0
        %2653 = vmatmul.mubr.f32.gmra.mrb[0].mxu0 %v2547
        %v2654 = vpop.f32.mrb[0].mxu0
        %v2655 = vadd.f32 %v2520, %v2654
        %v2656 = vpop.f32.mrb[0].mxu0
        %v2657 = vadd.f32 %v2520, %v2656
        %2658 = vmatprep.mubr.f32.mxu0 0.0
        %2659 = vmatmul.mubr.f32.gmra.mrb[0].mxu0 %v2550
        %v2660 = vpop.f32.mrb[0].mxu0
        %v2661 = vadd.f32 %v2525, %v2660
        %v2662 = vpop.f32.mrb[0].mxu0
        %v2663 = vadd.f32 %v2525, %v2662
        %2664 = vdwg.mxu0
        %v2665 = vmax.f32 %v2619, 0.0
        %v2666 = vmax.f32 %v2621, 0.0
        %v2667 = vmax.f32 %v2625, 0.0
        %v2668 = vmax.f32 %v2627, 0.0
        %v2669 = vmax.f32 %v2631, 0.0
        %v2670 = vmax.f32 %v2633, 0.0
        %v2671 = vmax.f32 %v2637, 0.0
        %v2672 = vmax.f32 %v2639, 0.0
        %v2673 = vmax.f32 %v2643, 0.0
        %v2674 = vmax.f32 %v2645, 0.0
        %v2675 = vmax.f32 %v2649, 0.0
        %v2676 = vmax.f32 %v2651, 0.0
        %v2677 = vmax.f32 %v2655, 0.0
        %v2678 = vmax.f32 %v2657, 0.0
        %v2679 = vmax.f32 %v2661, 0.0
        %v2680 = vmax.f32 %v2663, 0.0
        %v2681 = vld [vmem:[%s13] sm:$0xff]
        %v2682 = vld [vmem:[%s13 + $0x8] sm:$0xff]
        %v2683 = vld [vmem:[%s13 + $0x10] sm:$0xff]
        %v2684 = vld [vmem:[%s13 + $0x18] sm:$0xff]
        %v2685 = vld [vmem:[%s13 + $0x20] sm:$0xff]
        %v2686 = vld [vmem:[%s13 + $0x28] sm:$0xff]
        %v2687 = vld [vmem:[%s13 + $0x30] sm:$0xff]
        %v2688 = vld [vmem:[%s13 + $0x38] sm:$0xff]
        %2690 = vset.pattern.permute.xlu0 0
        %2691 = vperm.xlu0 %2690, %v2681
        %v2692 = vpop.permute.xlu0 %2691
        %2695 = vset.pattern.permute.xlu0 0
        %2696 = vperm.xlu0 %2695, %v2682
        %v2697 = vpop.permute.xlu0 %2696
        %2700 = vset.pattern.permute.xlu0 0
        %2701 = vperm.xlu0 %2700, %v2683
        %v2702 = vpop.permute.xlu0 %2701
        %2705 = vset.pattern.permute.xlu0 0
        %2706 = vperm.xlu0 %2705, %v2684
        %v2707 = vpop.permute.xlu0 %2706
        %2710 = vset.pattern.permute.xlu0 0
        %2711 = vperm.xlu0 %2710, %v2685
        %v2712 = vpop.permute.xlu0 %2711
        %2715 = vset.pattern.permute.xlu0 0
        %2716 = vperm.xlu0 %2715, %v2686
        %v2717 = vpop.permute.xlu0 %2716
        %2720 = vset.pattern.permute.xlu0 0
        %2721 = vperm.xlu0 %2720, %v2687
        %v2722 = vpop.permute.xlu0 %2721
        %2725 = vset.pattern.permute.xlu0 0
        %2726 = vperm.xlu0 %2725, %v2688
        %v2727 = vpop.permute.xlu0 %2726
        %v2729 = vmul.f32 %v2692, %v2665
        %v2730 = vmul.f32 %v2692, %v2666
        %v2731 = vmul.f32 %v2697, %v2667
        %v2732 = vmul.f32 %v2697, %v2668
        %v2733 = vmul.f32 %v2702, %v2669
        %v2734 = vmul.f32 %v2702, %v2670
        %v2735 = vmul.f32 %v2707, %v2671
        %v2736 = vmul.f32 %v2707, %v2672
        %v2737 = vmul.f32 %v2712, %v2673
        %v2738 = vmul.f32 %v2712, %v2674
        %v2739 = vmul.f32 %v2717, %v2675
        %v2740 = vmul.f32 %v2717, %v2676
        %v2741 = vmul.f32 %v2722, %v2677
        %v2742 = vmul.f32 %v2722, %v2678
        %v2743 = vmul.f32 %v2727, %v2679
        %v2744 = vmul.f32 %v2727, %v2680
        %v2745 = vadd.f32 %v2729, %v2731
        %v2746 = vadd.f32 %v2745, %v2733
        %v2747 = vadd.f32 %v2746, %v2735
        %v2748 = vadd.f32 %v2747, %v2737
        %v2749 = vadd.f32 %v2748, %v2739
        %v2750 = vadd.f32 %v2749, %v2741
        %v2751 = vadd.f32 %v2750, %v2743
        %v2752 = vrot.slane %v2751, 4
        %v2753 = vadd.f32 %v2751, %v2752
        %v2754 = vrot.slane %v2753, 2
        %v2755 = vadd.f32 %v2753, %v2754
        %v2756 = vrot.slane %v2755, 1
        %v2757 = vadd.f32 %v2755, %v2756
        %v2758 = vadd.f32 %v2730, %v2732
        %v2759 = vadd.f32 %v2758, %v2734
        %v2760 = vadd.f32 %v2759, %v2736
        %v2761 = vadd.f32 %v2760, %v2738
        %v2762 = vadd.f32 %v2761, %v2740
        %v2763 = vadd.f32 %v2762, %v2742
        %v2764 = vadd.f32 %v2763, %v2744
        %v2765 = vrot.slane %v2764, 4
        %v2766 = vadd.f32 %v2764, %v2765
        %v2767 = vrot.slane %v2766, 2
        %v2768 = vadd.f32 %v2766, %v2767
        %v2769 = vrot.slane %v2768, 1
        %v2770 = vadd.f32 %v2768, %v2769
        %v2771 = vld [vmem:[#allocation2] sm:$0x1]
        %2773 = vset.pattern.permute.xlu0 0
        %2774 = vperm.xlu0 %2773, %v2771
        %v2775 = vpop.permute.xlu0 %2774
        %v2777 = vlaneseq
        %v2778 = vshrl.u32 %v2777, 7
        %v2779 = vsub.s32 0, %v2778
        %v2780 = vrot.slane %v2775, %v2779
        %v2781 = vadd.f32 %v2757, %v2780
        %v2782 = vadd.f32 %v2770, %v2780
        %v2783 = vmul.f32 %v2781, 1.442695
        %v2784 = vpow.pop %v2783
        %v2785 = vmul.f32 %v2782, 1.442695
        %v2786 = vpow.pop %v2785
        %v2789 = vcombine.low %v2784, %v2786
        %v2791 = vunpack.c.l.s4 1966171168
        %v2792 = vunpack.c.0.s8 %v2791
        %v2793 = vlaneseq
        %v2794 = vshrl.u32 %v2793, 7
        %v2795 = vsub.s32 %v2792, %v2794
        %v2796 = vrot.slane %v2789, %v2795
        %v2798 = vunpack.c.l.s4 1966171168
        %v2799 = vunpack.c.0.s8 %v2798
        %v2800 = vlaneseq
        %v2801 = vshrl.u32 %v2800, 7
        %v2802 = vsub.s32 %v2799, %v2801
        %v2803 = vrot.slane %v2796, %v2802
        %v2805 = vlaneseq
        %vm2806 = vcmp.ge.s32.totalorder %v2805, 0
        %vm2807 = vcmp.lt.s32.totalorder %v2805, 256
        %vm2808 = vmand %vm2806, %vm2807
        %2809 = vst.msk [vmem:[%s488] sm:$0x3] %vm2808, %v2803
        %s2810 = sand.u32 %s359, 1
        %s2811 = scalar_lea.sflag [#allocation4], %s2810
        %s2812 = sand.u32 %s359, 1
        %s2813 = smul.addr %s2812, 2
        %s2814 = scalar_lea.vmem [#allocation3], %s2813
        // Predicated region
        $region81: #{pdn_forward.1} parent=79 // pred_check
          %p2815 = pneg %p369
        $region82: #{pdn_forward.1} parent=79 // pred_check_branch
          %2817 = sbr.rel (%p2815) target = $region84
        $region83: #{pdn_forward.1} parent=79 // pred_region
          %s2818 = smul.u32 2, %s31
          %s2820 = ssub.s32 32, 32
          %2821 = vsyncadd %s2811, %s2820
          %s2822 = smul.addr %s2818, 16
          %s2823 = scalar_lea.hbm %s15, %s2822
          %s2825 = sshll.u32 %s2814, 4
          %s2826 = int_to_ptr.vmem [resolvable:$true] %s2825
          %2828 = dma.vmem_to_hbm [thread:$0]  %s2826, 32, %s2823, %s2811
        $region84: #{pdn_forward.1} parent=79 // pred_fallthru
          _
      $region80: #{pdn_forward.1} parent=5 // pred_fallthru
        _
      %p2829 = scmp.le.s32.totalorder 2, %s26
      // Predicated region
      $region85: #{pdn_forward.1} parent=5 // pred_check
        %p2830 = pneg %p2829
      $region86: #{pdn_forward.1} parent=5 // pred_check_branch
        %2832 = sbr.rel (%p2830) target = $region88
      $region87: #{pdn_forward.1} parent=5 // pred_region
        %s2833 = ssub.s32 %s26, 2
        // Predicated region
        $region89: #{pdn_forward.1} parent=87 // pred_check
          %p2834 = pneg %p375
        $region90: #{pdn_forward.1} parent=87 // pred_check_branch
          %2836 = sbr.rel (%p2834) target = $region92
        $region91: #{pdn_forward.1} parent=87 // pred_region
          %s2837 = sand.u32 %s360, 1
          %s2838 = scalar_lea.sflag [#allocation4], %s2837
          %s2839 = sand.u32 %s360, 1
          %s2840 = smul.addr %s2839, 2
          %s2841 = scalar_lea.vmem [#allocation3], %s2840
          %2842 = dma.done %s2838, 32
        $region92: #{pdn_forward.1} parent=87 // pred_fallthru
          _
      $region88: #{pdn_forward.1} parent=5 // pred_fallthru
        _
    $region6: #{pdn_forward.1} parent=1 // loop_footer
      %s30 = sadd.s32 1, %s26
    $region7: #{pdn_forward.1} parent=1 // loop_footer_branch
      %25 = sbr.rel target = $region3
    $region8: #{pdn_forward.1} parent=1 // loop_exit
      _
    %2843 = vsyncpa [#allocation4], 1
    %s2844 = scalar_lea.sflag [#allocation4], 1
    %2845 = vsyncpa %s2844, 1

</llo_original>
